<compile_context>
chip_gen: v6e
topology: v6e:2x2x1
jax: 0.10.0
libtpu: 0.0.40
codegen_flags: <defaults>
</compile_context>

<pallas_src>
import functools

import jax
import jax.numpy as jnp
from jax.experimental import pallas as pl
from jax.experimental.pallas import tpu as pltpu


def _round_up(v: int, m: int) -> int:
    return ((v + m - 1) // m) * m


# ---------------------------------------------------------------------------
# Kernel
# ---------------------------------------------------------------------------
def _make_kernel(emit_feats: bool, head_in_bf16: bool):
    """Fused encoder(Linear+ReLU) + head(Linear).

    Grid: (batch_tiles, k_tiles). The K axis (columns of x / rows of w1) is a
    reduction accumulated into an f32 VMEM scratch; bias/ReLU/head run only on
    the last K step.
    """

    def kernel(x_ref, w1_ref, b1_ref, w2_ref, b2_ref, *refs):
        if emit_feats:
            feats_ref, out_ref, acc_ref = refs
        else:
            out_ref, acc_ref = refs

        k = pl.program_id(1)

        @pl.when(k == 0)
        def _():
            acc_ref[...] = jnp.zeros_like(acc_ref)

        # Encoder matmul: cast the f32 activation tile to bf16 in-VMEM (halves
        # the x HBM stream vs a wrapper-side cast); f32 accumulation on MXU.
        x = x_ref[...].astype(jnp.bfloat16)
        w1 = w1_ref[...]
        if w1.dtype != jnp.bfloat16:          # static branch; w1 normally bf16
            w1 = w1.astype(jnp.bfloat16)
        acc_ref[...] += jnp.dot(x, w1, preferred_element_type=jnp.float32)

        @pl.when(k == pl.num_programs(1) - 1)
        def _():
            h = jnp.maximum(acc_ref[...] + b1_ref[...], 0.0)
            if emit_feats:
                feats_ref[...] = h.astype(feats_ref.dtype)
            if head_in_bf16:
                o = jnp.dot(h.astype(jnp.bfloat16),
                            w2_ref[...].astype(jnp.bfloat16),
                            preferred_element_type=jnp.float32)
            else:
                # Tiny head (n_pad == 128): keep full f32 on the MXU.
                o = jnp.dot(h, w2_ref[...], preferred_element_type=jnp.float32)
            out_ref[...] = (o + b2_ref[...]).astype(out_ref.dtype)

    return kernel


# ---------------------------------------------------------------------------
# Tiling helpers
# ---------------------------------------------------------------------------
def _choose_batch_tiling(batch: int):
    """(tile_b, b_pad, grid_b)."""
    if batch <= 8:
        # Tiny batch: single full-extent block, no padding (full-extent blocks
        # are exempt from the (8,128) divisibility rule); latency-bound anyway.
        return batch, batch, 1
    # >= 2 grid steps whenever possible so the "parallel" batch axis can shard
    # across v7x's two TensorCores; cap the tile to amortize per-step pipeline
    # overhead without blowing VMEM.
    tile_b = min(256, _round_up((batch + 1) // 2, 8))
    b_pad = _round_up(batch, tile_b)
    return tile_b, b_pad, b_pad // tile_b


def _choose_k_tiling(d_in: int, hidden: int, w1_itemsize: int,
                     max_w1_vmem_bytes: int):
    """(tk, grid_k): split the d_in reduction so the resident w1 slice fits."""
    w1_bytes = d_in * hidden * w1_itemsize
    if w1_bytes <= max_w1_vmem_bytes or d_in % 128 != 0:
        return d_in, 1
    blk_bytes = 128 * hidden * w1_itemsize        # bytes per 128-column slice
    n_blocks = d_in // 128
    max_blocks = max(1, max_w1_vmem_bytes // blk_bytes)
    for nb in range(min(max_blocks, n_blocks), 0, -1):
        if n_blocks % nb == 0:                    # tk must divide d_in exactly
            return nb * 128, n_blocks // nb
    return 128, n_blocks


# ---------------------------------------------------------------------------
# Wrapper (forward pass of EncoderWithHead)
# ---------------------------------------------------------------------------
@functools.partial(
    jax.jit,
    static_argnames=("return_list", "feats_dtype", "single_buffer_weights",
                     "max_w1_vmem_bytes"))
def encoder_with_head(x_nchw, w1, b1, w2, b2, *, return_list=False,
                      feats_dtype=jnp.bfloat16, single_buffer_weights=True,
                      max_w1_vmem_bytes=24 * 1024 * 1024):
    """out = head(relu(flatten(x) @ w1 + b1) @ w2 + b2).

    x_nchw: [B, C, H, W] float32 (PyTorch NCHW); cast to bf16 inside the kernel.
    w1:     [D_in, HIDDEN] -- pass in bf16 (cast once at load time, not per call).
    b1:     [HIDDEN] f32.   w2: [HIDDEN, NUM_CLASSES] f32.   b2: [NUM_CLASSES] f32.
    return_list=True additionally returns the encoder features (bf16).
    """
    B = x_nchw.shape[0]
    d_in = x_nchw.shape[1] * x_nchw.shape[2] * x_nchw.shape[3]
    hidden = w1.shape[1]
    num_classes = w2.shape[1]

    # ---- tiling -------------------------------------------------------------
    n_pad = _round_up(num_classes, 128)                   # lane-dense head out
    tile_b, b_pad, grid_b = _choose_batch_tiling(B)
    tk, grid_k = _choose_k_tiling(d_in, hidden, w1.dtype.itemsize,
                                  max_w1_vmem_bytes)
    head_in_bf16 = n_pad > 128

    # ---- wrapper-side glue (no activation dtype casts here) -----------------
    x_flat = x_nchw.reshape(B, d_in)                       # stays f32
    if b_pad != B:
        x_flat = jnp.pad(x_flat, ((0, b_pad - B), (0, 0)))
    b1_2d = b1.reshape(1, hidden).astype(jnp.float32)
    w2_p = jnp.pad(w2.astype(jnp.float32), ((0, 0), (0, n_pad - num_classes)))
    b2_2d = jnp.pad(b2.astype(jnp.float32),
                    (0, n_pad - num_classes)).reshape(1, n_pad)

    # ---- BlockSpecs ----------------------------------------------------------
    def _const(shape):
        # Constant-index operand: single-buffer it (never re-DMA'd, half VMEM).
        if single_buffer_weights:
            return pl.BlockSpec(shape, lambda i, k: (0, 0),
                                pipeline_mode=pl.Buffered(1))
        return pl.BlockSpec(shape, lambda i, k: (0, 0))

    if grid_k == 1:
        w1_spec = _const((tk, hidden))                     # fully resident
    else:
        w1_spec = pl.BlockSpec((tk, hidden), lambda i, k: (k, 0))

    in_specs = [
        pl.BlockSpec((tile_b, tk), lambda i, k: (i, k)),   # x: tiled over (B,K)
        w1_spec,                                           # w1
        _const((1, hidden)),                               # b1
        _const((hidden, n_pad)),                           # w2 (lane-padded)
        _const((1, n_pad)),                                # b2 (lane-padded)
    ]
    out_spec = pl.BlockSpec((tile_b, n_pad), lambda i, k: (i, 0))
    feats_spec = pl.BlockSpec((tile_b, hidden), lambda i, k: (i, 0))
    scratch = [pltpu.VMEM((tile_b, hidden), jnp.float32)]  # f32 accumulator

    # ---- VMEM budget / compiler params --------------------------------------
    w1_bufs = 1 if (grid_k == 1 and single_buffer_weights) else 2
    cbufs = 1 if single_buffer_weights else 2
    feats_bytes = (2 * tile_b * hidden * jnp.dtype(feats_dtype).itemsize
                   if return_list else 0)
    vmem_need = (2 * tile_b * tk * 4                       # x (double-buffered)
                 + w1_bufs * tk * hidden * w1.dtype.itemsize
                 + cbufs * (hidden * 4 + hidden * n_pad * 4 + n_pad * 4)
                 + 2 * tile_b * n_pad * 4                  # out
                 + feats_bytes
                 + tile_b * hidden * 4)                    # acc scratch
    vmem_limit = int(min(max(vmem_need + (8 << 20), 32 << 20), 64 << 20))

    compiler_params = pltpu.CompilerParams(
        dimension_semantics=("parallel", "arbitrary"),
        vmem_limit_bytes=vmem_limit)

    flops = 2 * b_pad * (d_in * hidden + hidden * n_pad)
    bytes_acc = (b_pad * d_in * 4 + d_in * hidden * w1.dtype.itemsize
                 + hidden * 4 + hidden * n_pad * 4 + n_pad * 4
                 + b_pad * n_pad * 4
                 + (b_pad * hidden * jnp.dtype(feats_dtype).itemsize
                    if return_list else 0))
    cost = pl.CostEstimate(flops=flops, transcendentals=0,
                           bytes_accessed=bytes_acc)

    grid = (grid_b, grid_k)
    kernel = _make_kernel(emit_feats=return_list, head_in_bf16=head_in_bf16)

    if return_list:
        feats_pad, out_pad = pl.pallas_call(
            kernel,
            out_shape=(jax.ShapeDtypeStruct((b_pad, hidden), feats_dtype),
                       jax.ShapeDtypeStruct((b_pad, n_pad), jnp.float32)),
            grid=grid,
            in_specs=in_specs,
            out_specs=(feats_spec, out_spec),
            scratch_shapes=scratch,
            compiler_params=compiler_params,
            cost_estimate=cost,
        )(x_flat, w1, b1_2d, w2_p, b2_2d)
        feats = feats_pad if b_pad == B else feats_pad[:B]
        out = out_pad[:B, :num_classes]
        return [feats, out]

    out_pad = pl.pallas_call(
        kernel,
        out_shape=jax.ShapeDtypeStruct((b_pad, n_pad), jnp.float32),
        grid=grid,
        in_specs=in_specs,
        out_specs=out_spec,
        scratch_shapes=scratch,
        compiler_params=compiler_params,
        cost_estimate=cost,
    )(x_flat, w1, b1_2d, w2_p, b2_2d)
    return out_pad[:B, :num_classes]


# ---------------------------------------------------------------------------
# References
# ---------------------------------------------------------------------------
def _reference_matched(x_nchw, w1_bf16, b1, w2, b2):
    """Same numerics as the kernel: bf16 encoder inputs, f32 accumulation."""
    x_flat = x_nchw.reshape(x_nchw.shape[0], -1).astype(jnp.bfloat16)
    h = jnp.dot(x_flat, w1_bf16, preferred_element_type=jnp.float32) + b1
    h = jnp.maximum(h, 0.0)
    return h, jnp.dot(h, w2, preferred_element_type=jnp.float32) + b2


def _reference_f32(x_nchw, w1, b1, w2, b2):
    x_flat = x_nchw.reshape(x_nchw.shape[0], -1)
    h = jnp.maximum(x_flat @ w1 + b1, 0.0)
    return h, h @ w2 + b2


if __name__ == "__main__":
    B, C, H, W = 2, 4, 16, 16
    D_IN = C * H * W          # 1024
    HIDDEN = 128
    NUM_CLASSES = 16

    key = jax.random.PRNGKey(0)
    kx, kw1, kb1, kw2, kb2, kx2 = jax.random.split(key, 6)

    x = jax.random.normal(kx, (B, C, H, W), dtype=jnp.float32)
    w1_f32 = jax.random.normal(kw1, (D_IN, HIDDEN), jnp.float32) / jnp.sqrt(D_IN)
    b1 = jax.random.normal(kb1, (HIDDEN,), jnp.float32) * 0.01
    w2 = jax.random.normal(kw2, (HIDDEN, NUM_CLASSES), jnp.float32) / jnp.sqrt(HIDDEN)
    b2 = jax.random.normal(kb2, (NUM_CLASSES,), jnp.float32) * 0.01

    # "Load-time" weight cast: done once, outside the jitted forward.
    w1 = w1_f32.astype(jnp.bfloat16)

    # Probe: single-buffered constant-index weights (pl.Buffered(1)).  Fall
    # back to default double-buffering if this jax build rejects pipeline_mode.
    single_buffer = True
    try:
        out = encoder_with_head(x, w1, b1, w2, b2, single_buffer_weights=True)
        jax.block_until_ready(out)
    except Exception:
        single_buffer = False
        out = encoder_with_head(x, w1, b1, w2, b2, single_buffer_weights=False)
        jax.block_until_ready(out)

    ref_h, ref_out = _reference_matched(x, w1, b1, w2, b2)
    assert out.shape == (B, NUM_CLASSES)
    assert jnp.allclose(out, ref_out, atol=1e-2, rtol=1e-2), "out mismatch"

    # Loose sanity check vs. a pure-f32 reference (bf16 encoder inputs).
    _, ref_out_f32 = _reference_f32(x, w1_f32, b1, w2, b2)
    assert jnp.allclose(out, ref_out_f32, atol=5e-2, rtol=5e-2), "out vs f32 ref"

    # return_list path: [feats (bf16), out].
    feats, out_l = encoder_with_head(x, w1, b1, w2, b2, return_list=True,
                                     single_buffer_weights=single_buffer)
    jax.block_until_ready(out_l)
    assert feats.shape == (B, HIDDEN) and feats.dtype == jnp.bfloat16
    assert jnp.allclose(feats.astype(jnp.float32), ref_h,
                        atol=2e-2, rtol=2e-2), "feats mismatch"
    assert jnp.allclose(out_l, out, atol=1e-5, rtol=1e-5), "return_list out mismatch"

    # Forced K-tiled path (tiny w1 VMEM budget -> tk=256, grid_k=4): exercises
    # the accumulator / pl.when reduction used on v7x for large w1.
    out_kt = encoder_with_head(x, w1, b1, w2, b2,
                               single_buffer_weights=single_buffer,
                               max_w1_vmem_bytes=64 * 1024)
    jax.block_until_ready(out_kt)
    assert jnp.allclose(out_kt, out, atol=1e-3, rtol=1e-3), "K-tiled path mismatch"

    # Larger, non-tile-aligned batch: exercises batch padding + 2-step grid.
    B2 = 24
    x2 = jax.random.normal(kx2, (B2, C, H, W), dtype=jnp.float32)
    out2 = encoder_with_head(x2, w1, b1, w2, b2,
                             single_buffer_weights=single_buffer)
    jax.block_until_ready(out2)
    _, ref_out2 = _reference_matched(x2, w1, b1, w2, b2)
    assert out2.shape == (B2, NUM_CLASSES)
    assert jnp.allclose(out2, ref_out2, atol=1e-2, rtol=1e-2), "batched out mismatch"

    print("KERNEL_OK")
</pallas_src>

<mosaic_0001>
module attributes {stable_mosaic.version = 11 : i64} {
  func.func @kernel(%arg0: i32, %arg1: i32, %arg2: memref<2x1024xf32, #tpu.memory_space<vmem>>, %arg3: memref<1024x128xbf16, #tpu.memory_space<vmem>>, %arg4: memref<1x128xf32, #tpu.memory_space<vmem>>, %arg5: memref<128x128xf32, #tpu.memory_space<vmem>>, %arg6: memref<1x128xf32, #tpu.memory_space<vmem>>, %arg7: memref<2x128xf32, #tpu.memory_space<vmem>>, %arg8: memref<2x128xf32, #tpu.memory_space<vmem>>) attributes {dimension_semantics = [#tpu.dimension_semantics<parallel>, #tpu.dimension_semantics<arbitrary>], iteration_bounds = array<i64: 1, 1>, scalar_prefetch = 0 : i64, scratch_operands = 1 : i64, tpu.core_type = #tpu.core_type<tc>, window_params = [{transform_indices = @transform_0, window_bounds = array<i64: 2, 1024>}, {pipeline_mode = #tpu.pipeline_mode<synchronous>, transform_indices = @transform_1, window_bounds = array<i64: 1024, 128>}, {pipeline_mode = #tpu.pipeline_mode<synchronous>, transform_indices = @transform_2, window_bounds = array<i64: 1, 128>}, {pipeline_mode = #tpu.pipeline_mode<synchronous>, transform_indices = @transform_3, window_bounds = array<i64: 128, 128>}, {pipeline_mode = #tpu.pipeline_mode<synchronous>, transform_indices = @transform_4, window_bounds = array<i64: 1, 128>}, {transform_indices = @transform_5, window_bounds = array<i64: 2, 128>}]} {
    %c0_i32 = arith.constant 0 : i32
    %0 = arith.cmpi eq, %arg1, %c0_i32 : i32
    %1 = arith.extui %0 : i1 to i32
    %c0_i32_0 = arith.constant 0 : i32
    %2 = arith.cmpi ne, %1, %c0_i32_0 : i32
    scf.if %2 {
      %cst_10 = arith.constant 0.000000e+00 : f32
      %13 = vector.broadcast %cst_10 : f32 to vector<2x128xf32>
      %c0_11 = arith.constant 0 : index
      %c0_12 = arith.constant 0 : index
      %14 = vector.load %arg8[%c0_11, %c0_12] : memref<2x128xf32, #tpu.memory_space<vmem>>, vector<2x128xf32>
      tpu.vector_store %arg8[%c0_11, %c0_12], %13 {strides = array<i32>} : memref<2x128xf32, #tpu.memory_space<vmem>>, vector<2x128xf32>,
    } else {
    }
    %c0 = arith.constant 0 : index
    %c0_1 = arith.constant 0 : index
    %3 = vector.load %arg2[%c0, %c0_1] : memref<2x1024xf32, #tpu.memory_space<vmem>>, vector<2x1024xf32>
    %4 = arith.truncf %3 : vector<2x1024xf32> to vector<2x1024xbf16>
    %c0_2 = arith.constant 0 : index
    %c0_3 = arith.constant 0 : index
    %5 = vector.load %arg3[%c0_2, %c0_3] : memref<1024x128xbf16, #tpu.memory_space<vmem>>, vector<1024x128xbf16>
    %c0_4 = arith.constant 0 : index
    %c0_5 = arith.constant 0 : index
    %6 = vector.load %arg8[%c0_4, %c0_5] : memref<2x128xf32, #tpu.memory_space<vmem>>, vector<2x128xf32>
    %cst = arith.constant dense<0.000000e+00> : vector<2x128xf32>
    %7 = tpu.matmul %4, %5, %cst {dimension_numbers = #tpu.dot_dimension_numbers<[1], [0], [0], [1], [0, 0, 1, 1], [], []>} : vector<2x1024xbf16>, vector<1024x128xbf16>, vector<2x128xf32> -> vector<2x128xf32>
    %8 = arith.addf %6, %7 : vector<2x128xf32>
    %c0_6 = arith.constant 0 : index
    %c0_7 = arith.constant 0 : index
    %9 = vector.load %arg8[%c0_6, %c0_7] : memref<2x128xf32, #tpu.memory_space<vmem>>, vector<2x128xf32>
    tpu.vector_store %arg8[%c0_6, %c0_7], %8 {strides = array<i32>} : memref<2x128xf32, #tpu.memory_space<vmem>>, vector<2x128xf32>,
    %c0_i32_8 = arith.constant 0 : i32
    %10 = arith.cmpi eq, %arg1, %c0_i32_8 : i32
    %11 = arith.extui %10 : i1 to i32
    %c0_i32_9 = arith.constant 0 : i32
    %12 = arith.cmpi ne, %11, %c0_i32_9 : i32
    scf.if %12 {
      %c0_10 = arith.constant 0 : index
      %c0_11 = arith.constant 0 : index
      %13 = vector.load %arg8[%c0_10, %c0_11] : memref<2x128xf32, #tpu.memory_space<vmem>>, vector<2x128xf32>
      %c0_12 = arith.constant 0 : index
      %c0_13 = arith.constant 0 : index
      %14 = vector.load %arg4[%c0_12, %c0_13] : memref<1x128xf32, #tpu.memory_space<vmem>>, vector<1x128xf32>
      %15 = vector.broadcast %14 : vector<1x128xf32> to vector<2x128xf32>
      %16 = arith.addf %13, %15 : vector<2x128xf32>
      %cst_14 = arith.constant 0.000000e+00 : f32
      %17 = vector.broadcast %cst_14 : f32 to vector<2x128xf32>
      %18 = arith.maximumf %16, %17 : vector<2x128xf32>
      %c0_15 = arith.constant 0 : index
      %c0_16 = arith.constant 0 : index
      %19 = vector.load %arg5[%c0_15, %c0_16] : memref<128x128xf32, #tpu.memory_space<vmem>>, vector<128x128xf32>
      %cst_17 = arith.constant dense<0.000000e+00> : vector<2x128xf32>
      %20 = tpu.matmul %18, %19, %cst_17 {dimension_numbers = #tpu.dot_dimension_numbers<[1], [0], [0], [1], [0, 0, 1, 1], [], []>} : vector<2x128xf32>, vector<128x128xf32>, vector<2x128xf32> -> vector<2x128xf32>
      %c0_18 = arith.constant 0 : index
      %c0_19 = arith.constant 0 : index
      %21 = vector.load %arg6[%c0_18, %c0_19] : memref<1x128xf32, #tpu.memory_space<vmem>>, vector<1x128xf32>
      %22 = vector.broadcast %21 : vector<1x128xf32> to vector<2x128xf32>
      %23 = arith.addf %20, %22 : vector<2x128xf32>
      %c0_20 = arith.constant 0 : index
      %c0_21 = arith.constant 0 : index
      %24 = vector.load %arg7[%c0_20, %c0_21] : memref<2x128xf32, #tpu.memory_space<vmem>>, vector<2x128xf32>
      tpu.vector_store %arg7[%c0_20, %c0_21], %23 {strides = array<i32>} : memref<2x128xf32, #tpu.memory_space<vmem>>, vector<2x128xf32>,
    } else {
    }
    return
  }
  func.func @transform_0(%arg0: i32, %arg1: i32) -> (i32, i32) {
    %c0_i32 = arith.constant 0 : i32
    return %arg0, %arg1 : i32, i32
  }
  func.func @transform_1(%arg0: i32, %arg1: i32) -> (i32, i32) {
    %c0_i32 = arith.constant 0 : i32
    %c0_i32_0 = arith.constant 0 : i32
    %c0_i32_1 = arith.constant 0 : i32
    return %c0_i32, %c0_i32_0 : i32, i32
  }
  func.func @transform_2(%arg0: i32, %arg1: i32) -> (i32, i32) {
    %c0_i32 = arith.constant 0 : i32
    %c0_i32_0 = arith.constant 0 : i32
    %c0_i32_1 = arith.constant 0 : i32
    return %c0_i32, %c0_i32_0 : i32, i32
  }
  func.func @transform_3(%arg0: i32, %arg1: i32) -> (i32, i32) {
    %c0_i32 = arith.constant 0 : i32
    %c0_i32_0 = arith.constant 0 : i32
    %c0_i32_1 = arith.constant 0 : i32
    return %c0_i32, %c0_i32_0 : i32, i32
  }
  func.func @transform_4(%arg0: i32, %arg1: i32) -> (i32, i32) {
    %c0_i32 = arith.constant 0 : i32
    %c0_i32_0 = arith.constant 0 : i32
    %c0_i32_1 = arith.constant 0 : i32
    return %c0_i32, %c0_i32_0 : i32, i32
  }
  func.func @transform_5(%arg0: i32, %arg1: i32) -> (i32, i32) {
    %c0_i32 = arith.constant 0 : i32
    %c0_i32_0 = arith.constant 0 : i32
    return %arg0, %c0_i32 : i32, i32
  }
}

module attributes {stable_mosaic.version = 11 : i64} {
  func.func @kernel(%arg0: i32, %arg1: i32, %arg2: memref<2x1024xf32, #tpu.memory_space<vmem>>, %arg3: memref<1024x128xbf16, #tpu.memory_space<vmem>>, %arg4: memref<1x128xf32, #tpu.memory_space<vmem>>, %arg5: memref<128x128xf32, #tpu.memory_space<vmem>>, %arg6: memref<1x128xf32, #tpu.memory_space<vmem>>, %arg7: memref<2x128xf32, #tpu.memory_space<vmem>>, %arg8: memref<2x128xf32, #tpu.memory_space<vmem>>) attributes {dimension_semantics = [#tpu.dimension_semantics<parallel>, #tpu.dimension_semantics<arbitrary>], iteration_bounds = array<i64: 1, 1>, scalar_prefetch = 0 : i64, scratch_operands = 1 : i64, tpu.core_type = #tpu.core_type<tc>, window_params = [{transform_indices = @transform_0, window_bounds = array<i64: 2, 1024>}, {pipeline_mode = #tpu.pipeline_mode<synchronous>, transform_indices = @transform_1, window_bounds = array<i64: 1024, 128>}, {pipeline_mode = #tpu.pipeline_mode<synchronous>, transform_indices = @transform_2, window_bounds = array<i64: 1, 128>}, {pipeline_mode = #tpu.pipeline_mode<synchronous>, transform_indices = @transform_3, window_bounds = array<i64: 128, 128>}, {pipeline_mode = #tpu.pipeline_mode<synchronous>, transform_indices = @transform_4, window_bounds = array<i64: 1, 128>}, {transform_indices = @transform_5, window_bounds = array<i64: 2, 128>}]} {
    %c0_i32 = arith.constant 0 : i32
    %0 = arith.cmpi eq, %arg1, %c0_i32 : i32
    %1 = arith.extui %0 : i1 to i32
    %c0_i32_0 = arith.constant 0 : i32
    %2 = arith.cmpi ne, %1, %c0_i32_0 : i32
    scf.if %2 {
      %cst_10 = arith.constant 0.000000e+00 : f32
      %13 = vector.broadcast %cst_10 : f32 to vector<2x128xf32>
      %c0_11 = arith.constant 0 : index
      %c0_12 = arith.constant 0 : index
      %14 = vector.load %arg8[%c0_11, %c0_12] : memref<2x128xf32, #tpu.memory_space<vmem>>, vector<2x128xf32>
      tpu.vector_store %arg8[%c0_11, %c0_12], %13 {strides = array<i32>} : memref<2x128xf32, #tpu.memory_space<vmem>>, vector<2x128xf32>,
    } else {
    }
    %c0 = arith.constant 0 : index
    %c0_1 = arith.constant 0 : index
    %3 = vector.load %arg2[%c0, %c0_1] : memref<2x1024xf32, #tpu.memory_space<vmem>>, vector<2x1024xf32>
    %4 = arith.truncf %3 : vector<2x1024xf32> to vector<2x1024xbf16>
    %c0_2 = arith.constant 0 : index
    %c0_3 = arith.constant 0 : index
    %5 = vector.load %arg3[%c0_2, %c0_3] : memref<1024x128xbf16, #tpu.memory_space<vmem>>, vector<1024x128xbf16>
    %c0_4 = arith.constant 0 : index
    %c0_5 = arith.constant 0 : index
    %6 = vector.load %arg8[%c0_4, %c0_5] : memref<2x128xf32, #tpu.memory_space<vmem>>, vector<2x128xf32>
    %cst = arith.constant dense<0.000000e+00> : vector<2x128xf32>
    %7 = tpu.matmul %4, %5, %cst {dimension_numbers = #tpu.dot_dimension_numbers<[1], [0], [0], [1], [0, 0, 1, 1], [], []>} : vector<2x1024xbf16>, vector<1024x128xbf16>, vector<2x128xf32> -> vector<2x128xf32>
    %8 = arith.addf %6, %7 : vector<2x128xf32>
    %c0_6 = arith.constant 0 : index
    %c0_7 = arith.constant 0 : index
    %9 = vector.load %arg8[%c0_6, %c0_7] : memref<2x128xf32, #tpu.memory_space<vmem>>, vector<2x128xf32>
    tpu.vector_store %arg8[%c0_6, %c0_7], %8 {strides = array<i32>} : memref<2x128xf32, #tpu.memory_space<vmem>>, vector<2x128xf32>,
    %c0_i32_8 = arith.constant 0 : i32
    %10 = arith.cmpi eq, %arg1, %c0_i32_8 : i32
    %11 = arith.extui %10 : i1 to i32
    %c0_i32_9 = arith.constant 0 : i32
    %12 = arith.cmpi ne, %11, %c0_i32_9 : i32
    scf.if %12 {
      %c0_10 = arith.constant 0 : index
      %c0_11 = arith.constant 0 : index
      %13 = vector.load %arg8[%c0_10, %c0_11] : memref<2x128xf32, #tpu.memory_space<vmem>>, vector<2x128xf32>
      %c0_12 = arith.constant 0 : index
      %c0_13 = arith.constant 0 : index
      %14 = vector.load %arg4[%c0_12, %c0_13] : memref<1x128xf32, #tpu.memory_space<vmem>>, vector<1x128xf32>
      %15 = vector.broadcast %14 : vector<1x128xf32> to vector<2x128xf32>
      %16 = arith.addf %13, %15 : vector<2x128xf32>
      %cst_14 = arith.constant 0.000000e+00 : f32
      %17 = vector.broadcast %cst_14 : f32 to vector<2x128xf32>
      %18 = arith.maximumf %16, %17 : vector<2x128xf32>
      %c0_15 = arith.constant 0 : index
      %c0_16 = arith.constant 0 : index
      %19 = vector.load %arg5[%c0_15, %c0_16] : memref<128x128xf32, #tpu.memory_space<vmem>>, vector<128x128xf32>
      %cst_17 = arith.constant dense<0.000000e+00> : vector<2x128xf32>
      %20 = tpu.matmul %18, %19, %cst_17 {dimension_numbers = #tpu.dot_dimension_numbers<[1], [0], [0], [1], [0, 0, 1, 1], [], []>} : vector<2x128xf32>, vector<128x128xf32>, vector<2x128xf32> -> vector<2x128xf32>
      %c0_18 = arith.constant 0 : index
      %c0_19 = arith.constant 0 : index
      %21 = vector.load %arg6[%c0_18, %c0_19] : memref<1x128xf32, #tpu.memory_space<vmem>>, vector<1x128xf32>
      %22 = vector.broadcast %21 : vector<1x128xf32> to vector<2x128xf32>
      %23 = arith.addf %20, %22 : vector<2x128xf32>
      %c0_20 = arith.constant 0 : index
      %c0_21 = arith.constant 0 : index
      %24 = vector.load %arg7[%c0_20, %c0_21] : memref<2x128xf32, #tpu.memory_space<vmem>>, vector<2x128xf32>
      tpu.vector_store %arg7[%c0_20, %c0_21], %23 {strides = array<i32>} : memref<2x128xf32, #tpu.memory_space<vmem>>, vector<2x128xf32>,
    } else {
    }
    return
  }
  func.func @transform_0(%arg0: i32, %arg1: i32) -> (i32, i32) {
    %c0_i32 = arith.constant 0 : i32
    return %arg0, %arg1 : i32, i32
  }
  func.func @transform_1(%arg0: i32, %arg1: i32) -> (i32, i32) {
    %c0_i32 = arith.constant 0 : i32
    %c0_i32_0 = arith.constant 0 : i32
    %c0_i32_1 = arith.constant 0 : i32
    return %c0_i32, %c0_i32_0 : i32, i32
  }
  func.func @transform_2(%arg0: i32, %arg1: i32) -> (i32, i32) {
    %c0_i32 = arith.constant 0 : i32
    %c0_i32_0 = arith.constant 0 : i32
    %c0_i32_1 = arith.constant 0 : i32
    return %c0_i32, %c0_i32_0 : i32, i32
  }
  func.func @transform_3(%arg0: i32, %arg1: i32) -> (i32, i32) {
    %c0_i32 = arith.constant 0 : i32
    %c0_i32_0 = arith.constant 0 : i32
    %c0_i32_1 = arith.constant 0 : i32
    return %c0_i32, %c0_i32_0 : i32, i32
  }
  func.func @transform_4(%arg0: i32, %arg1: i32) -> (i32, i32) {
    %c0_i32 = arith.constant 0 : i32
    %c0_i32_0 = arith.constant 0 : i32
    %c0_i32_1 = arith.constant 0 : i32
    return %c0_i32, %c0_i32_0 : i32, i32
  }
  func.func @transform_5(%arg0: i32, %arg1: i32) -> (i32, i32) {
    %c0_i32 = arith.constant 0 : i32
    %c0_i32_0 = arith.constant 0 : i32
    return %arg0, %c0_i32 : i32, i32
  }
}

</mosaic_0001>

<llo_original>
// kernel: encoder_with_head.1
$region0: #{encoder_with_head.1}
  #allocation0 [shape = 'u32[]', space=smem, size = 0x4, offset = 0x4, fixed_abs, tag = 'smem constant byte address 0x4 - core index']
  #allocation1 [shape = 'u32[144,128]{1,0:T(1,128)}', space=vmem, size = 0x12000, scoped, tag = 'internal scratch']
  #allocation2 [shape = 'f32[2,128]{1,0:T(2,128)}', space=vmem, size = 0x400, scoped, tag = 'scratch operand']
  %s0 = inlined_call_operand.vmem [shape: f32[2,1024], index: 0, kind: input, shape index: {}]
  %s1 = inlined_call_operand.vmem [shape: bf16[1024,128], index: 1, kind: input, shape index: {}]
  %s2 = inlined_call_operand.vmem [shape: f32[1,128], index: 2, kind: input, shape index: {}]
  %s3 = inlined_call_operand.vmem [shape: f32[128,128], index: 3, kind: input, shape index: {}]
  %s4 = inlined_call_operand.vmem [shape: f32[1,128], index: 4, kind: input, shape index: {}]
  %s5 = inlined_call_operand.hbm [shape: f32[2,128], index: 5, kind: output, shape index: {}]
  %s6 = sld [smem:[#allocation0]]
  $region38: #{encoder_with_head.1} parent=0
    _
  %s8 = ssub.s32 1, %s6
  %s9 = scalar_select 0, %s8, %s6
  $region1: #{encoder_with_head.1} parent=0
    #allocation3 [shape = 'u8[1024]{0}', space=vmem, size = 0x400, scoped, tag = 'output window, operand 0, single buffered']
    #allocation4 [shape = 's32[1]{0}', space=sflag, size = 0x4, scoped, tag = 'scoped memory for encoder_with_head.1']
    %10 = vsyncpa [#allocation4], 0
    // Predicated region
    $region2: #{encoder_with_head.1} parent=1 // pred_check
      _
    $region3: #{encoder_with_head.1} parent=1 // pred_check_branch
      %12 = sbr.rel (0) target = $region5
    $region4: #{encoder_with_head.1} parent=1 // pred_region
      _
    $region5: #{encoder_with_head.1} parent=1 // pred_fallthru
      _
    // Predicated region
    $region6: #{encoder_with_head.1} parent=1 // pred_check
      _
    $region7: #{encoder_with_head.1} parent=1 // pred_check_branch
      %14 = sbr.rel (0) target = $region9
    $region8: #{encoder_with_head.1} parent=1 // pred_region
      _
    $region9: #{encoder_with_head.1} parent=1 // pred_fallthru
      _
    // Predicated region
    $region10: #{encoder_with_head.1} parent=1 // pred_check
      _
    $region11: #{encoder_with_head.1} parent=1 // pred_check_branch
      %16 = sbr.rel (0) target = $region13
    $region12: #{encoder_with_head.1} parent=1 // pred_region
      _
    $region13: #{encoder_with_head.1} parent=1 // pred_fallthru
      _
    // Predicated region
    $region14: #{encoder_with_head.1} parent=1 // pred_check
      _
    $region15: #{encoder_with_head.1} parent=1 // pred_check_branch
      %18 = sbr.rel (0) target = $region17
    $region16: #{encoder_with_head.1} parent=1 // pred_region
      _
    $region17: #{encoder_with_head.1} parent=1 // pred_fallthru
      _
    // Predicated region
    $region18: #{encoder_with_head.1} parent=1 // pred_check
      _
    $region19: #{encoder_with_head.1} parent=1 // pred_check_branch
      %20 = sbr.rel (0) target = $region21
    $region20: #{encoder_with_head.1} parent=1 // pred_region
      _
    $region21: #{encoder_with_head.1} parent=1 // pred_fallthru
      _
    %p22 = scmp.eq.s32.totalorder 0, 0
    // Predicated region
    $region22: #{encoder_with_head.1} parent=1 // pred_check
      %p23 = pneg %p22
    $region23: #{encoder_with_head.1} parent=1 // pred_check_branch
      %25 = sbr.rel (%p23) target = $region25
    $region24: #{encoder_with_head.1} parent=1 // pred_region
      %26 = vst [vmem:[#allocation2] sm:$0x3] 0.0
    $region25: #{encoder_with_head.1} parent=1 // pred_fallthru
      _
    %v27 = vld [vmem:[%s0] sm:$0xff]
    %v28 = vld [vmem:[%s0 + $0x8] sm:$0xff]
    %v31 = vcombine.high %v27, %v27
    %v33 = vunpack.c.l.s4 1983009808
    %v34 = vunpack.c.0.s8 %v33
    %v35 = vlaneseq
    %v36 = vshrl.u32 %v35, 7
    %v37 = vsub.s32 %v34, %v36
    %v38 = vrot.slane %v27, %v37
    %v40 = vunpack.c.l.s4 1983009808
    %v41 = vunpack.c.0.s8 %v40
    %v42 = vlaneseq
    %v43 = vshrl.u32 %v42, 7
    %v44 = vsub.s32 %v41, %v43
    %v45 = vrot.slane %v31, %v44
    %v46 = vcombine.high %v38, %v38
    %v47 = vcombine.high %v45, %v45
    %v48 = vcombine.high %v28, %v28
    %v50 = vunpack.c.l.s4 1983009808
    %v51 = vunpack.c.0.s8 %v50
    %v52 = vlaneseq
    %v53 = vshrl.u32 %v52, 7
    %v54 = vsub.s32 %v51, %v53
    %v55 = vrot.slane %v28, %v54
    %v57 = vunpack.c.l.s4 1983009808
    %v58 = vunpack.c.0.s8 %v57
    %v59 = vlaneseq
    %v60 = vshrl.u32 %v59, 7
    %v61 = vsub.s32 %v58, %v60
    %v62 = vrot.slane %v48, %v61
    %v63 = vcombine.high %v55, %v55
    %v64 = vcombine.high %v62, %v62
    %v73 = vpack.c.bf16 %v38, %v38
    %v74 = vpack.c.bf16 %v46, %v46
    %v75 = vpack.c.bf16 %v45, %v45
    %v76 = vpack.c.bf16 %v47, %v47
    %v77 = vpack.c.bf16 %v55, %v55
    %v78 = vpack.c.bf16 %v63, %v63
    %v79 = vpack.c.bf16 %v62, %v62
    %v80 = vpack.c.bf16 %v64, %v64
    %v81 = vld [vmem:[%s1] sm:$0xf]
    %v82 = vld [vmem:[%s1 + $0x4] sm:$0xf]
    %v83 = vld [vmem:[%s1 + $0x8] sm:$0xf]
    %v84 = vld [vmem:[%s1 + $0xc] sm:$0xf]
    %v85 = vld [vmem:[%s1 + $0x10] sm:$0xf]
    %v86 = vld [vmem:[%s1 + $0x14] sm:$0xf]
    %v87 = vld [vmem:[%s1 + $0x18] sm:$0xf]
    %v88 = vld [vmem:[%s1 + $0x1c] sm:$0xf]
    %v89 = vld [vmem:[%s1 + $0x20] sm:$0xf]
    %v90 = vld [vmem:[%s1 + $0x24] sm:$0xf]
    %v91 = vld [vmem:[%s1 + $0x28] sm:$0xf]
    %v92 = vld [vmem:[%s1 + $0x2c] sm:$0xf]
    %v93 = vld [vmem:[%s1 + $0x30] sm:$0xf]
    %v94 = vld [vmem:[%s1 + $0x34] sm:$0xf]
    %v95 = vld [vmem:[%s1 + $0x38] sm:$0xf]
    %v96 = vld [vmem:[%s1 + $0x3c] sm:$0xf]
    %v97 = vld [vmem:[%s1 + $0x40] sm:$0xf]
    %v98 = vld [vmem:[%s1 + $0x44] sm:$0xf]
    %v99 = vld [vmem:[%s1 + $0x48] sm:$0xf]
    %v100 = vld [vmem:[%s1 + $0x4c] sm:$0xf]
    %v101 = vld [vmem:[%s1 + $0x50] sm:$0xf]
    %v102 = vld [vmem:[%s1 + $0x54] sm:$0xf]
    %v103 = vld [vmem:[%s1 + $0x58] sm:$0xf]
    %v104 = vld [vmem:[%s1 + $0x5c] sm:$0xf]
    %v105 = vld [vmem:[%s1 + $0x60] sm:$0xf]
    %v106 = vld [vmem:[%s1 + $0x64] sm:$0xf]
    %v107 = vld [vmem:[%s1 + $0x68] sm:$0xf]
    %v108 = vld [vmem:[%s1 + $0x6c] sm:$0xf]
    %v109 = vld [vmem:[%s1 + $0x70] sm:$0xf]
    %v110 = vld [vmem:[%s1 + $0x74] sm:$0xf]
    %v111 = vld [vmem:[%s1 + $0x78] sm:$0xf]
    %v112 = vld [vmem:[%s1 + $0x7c] sm:$0xf]
    %v113 = vld [vmem:[%s1 + $0x80] sm:$0xf]
    %v114 = vld [vmem:[%s1 + $0x84] sm:$0xf]
    %v115 = vld [vmem:[%s1 + $0x88] sm:$0xf]
    %v116 = vld [vmem:[%s1 + $0x8c] sm:$0xf]
    %v117 = vld [vmem:[%s1 + $0x90] sm:$0xf]
    %v118 = vld [vmem:[%s1 + $0x94] sm:$0xf]
    %v119 = vld [vmem:[%s1 + $0x98] sm:$0xf]
    %v120 = vld [vmem:[%s1 + $0x9c] sm:$0xf]
    %v121 = vld [vmem:[%s1 + $0xa0] sm:$0xf]
    %v122 = vld [vmem:[%s1 + $0xa4] sm:$0xf]
    %v123 = vld [vmem:[%s1 + $0xa8] sm:$0xf]
    %v124 = vld [vmem:[%s1 + $0xac] sm:$0xf]
    %v125 = vld [vmem:[%s1 + $0xb0] sm:$0xf]
    %v126 = vld [vmem:[%s1 + $0xb4] sm:$0xf]
    %v127 = vld [vmem:[%s1 + $0xb8] sm:$0xf]
    %v128 = vld [vmem:[%s1 + $0xbc] sm:$0xf]
    %v129 = vld [vmem:[%s1 + $0xc0] sm:$0xf]
    %v130 = vld [vmem:[%s1 + $0xc4] sm:$0xf]
    %v131 = vld [vmem:[%s1 + $0xc8] sm:$0xf]
    %v132 = vld [vmem:[%s1 + $0xcc] sm:$0xf]
    %v133 = vld [vmem:[%s1 + $0xd0] sm:$0xf]
    %v134 = vld [vmem:[%s1 + $0xd4] sm:$0xf]
    %v135 = vld [vmem:[%s1 + $0xd8] sm:$0xf]
    %v136 = vld [vmem:[%s1 + $0xdc] sm:$0xf]
    %v137 = vld [vmem:[%s1 + $0xe0] sm:$0xf]
    %v138 = vld [vmem:[%s1 + $0xe4] sm:$0xf]
    %v139 = vld [vmem:[%s1 + $0xe8] sm:$0xf]
    %v140 = vld [vmem:[%s1 + $0xec] sm:$0xf]
    %v141 = vld [vmem:[%s1 + $0xf0] sm:$0xf]
    %v142 = vld [vmem:[%s1 + $0xf4] sm:$0xf]
    %v143 = vld [vmem:[%s1 + $0xf8] sm:$0xf]
    %v144 = vld [vmem:[%s1 + $0xfc] sm:$0xf]
    %v145 = vld [vmem:[%s1 + $0x100] sm:$0xf]
    %v146 = vld [vmem:[%s1 + $0x104] sm:$0xf]
    %v147 = vld [vmem:[%s1 + $0x108] sm:$0xf]
    %v148 = vld [vmem:[%s1 + $0x10c] sm:$0xf]
    %v149 = vld [vmem:[%s1 + $0x110] sm:$0xf]
    %v150 = vld [vmem:[%s1 + $0x114] sm:$0xf]
    %v151 = vld [vmem:[%s1 + $0x118] sm:$0xf]
    %v152 = vld [vmem:[%s1 + $0x11c] sm:$0xf]
    %v153 = vld [vmem:[%s1 + $0x120] sm:$0xf]
    %v154 = vld [vmem:[%s1 + $0x124] sm:$0xf]
    %v155 = vld [vmem:[%s1 + $0x128] sm:$0xf]
    %v156 = vld [vmem:[%s1 + $0x12c] sm:$0xf]
    %v157 = vld [vmem:[%s1 + $0x130] sm:$0xf]
    %v158 = vld [vmem:[%s1 + $0x134] sm:$0xf]
    %v159 = vld [vmem:[%s1 + $0x138] sm:$0xf]
    %v160 = vld [vmem:[%s1 + $0x13c] sm:$0xf]
    %v161 = vld [vmem:[%s1 + $0x140] sm:$0xf]
    %v162 = vld [vmem:[%s1 + $0x144] sm:$0xf]
    %v163 = vld [vmem:[%s1 + $0x148] sm:$0xf]
    %v164 = vld [vmem:[%s1 + $0x14c] sm:$0xf]
    %v165 = vld [vmem:[%s1 + $0x150] sm:$0xf]
    %v166 = vld [vmem:[%s1 + $0x154] sm:$0xf]
    %v167 = vld [vmem:[%s1 + $0x158] sm:$0xf]
    %v168 = vld [vmem:[%s1 + $0x15c] sm:$0xf]
    %v169 = vld [vmem:[%s1 + $0x160] sm:$0xf]
    %v170 = vld [vmem:[%s1 + $0x164] sm:$0xf]
    %v171 = vld [vmem:[%s1 + $0x168] sm:$0xf]
    %v172 = vld [vmem:[%s1 + $0x16c] sm:$0xf]
    %v173 = vld [vmem:[%s1 + $0x170] sm:$0xf]
    %v174 = vld [vmem:[%s1 + $0x174] sm:$0xf]
    %v175 = vld [vmem:[%s1 + $0x178] sm:$0xf]
    %v176 = vld [vmem:[%s1 + $0x17c] sm:$0xf]
    %v177 = vld [vmem:[%s1 + $0x180] sm:$0xf]
    %v178 = vld [vmem:[%s1 + $0x184] sm:$0xf]
    %v179 = vld [vmem:[%s1 + $0x188] sm:$0xf]
    %v180 = vld [vmem:[%s1 + $0x18c] sm:$0xf]
    %v181 = vld [vmem:[%s1 + $0x190] sm:$0xf]
    %v182 = vld [vmem:[%s1 + $0x194] sm:$0xf]
    %v183 = vld [vmem:[%s1 + $0x198] sm:$0xf]
    %v184 = vld [vmem:[%s1 + $0x19c] sm:$0xf]
    %v185 = vld [vmem:[%s1 + $0x1a0] sm:$0xf]
    %v186 = vld [vmem:[%s1 + $0x1a4] sm:$0xf]
    %v187 = vld [vmem:[%s1 + $0x1a8] sm:$0xf]
    %v188 = vld [vmem:[%s1 + $0x1ac] sm:$0xf]
    %v189 = vld [vmem:[%s1 + $0x1b0] sm:$0xf]
    %v190 = vld [vmem:[%s1 + $0x1b4] sm:$0xf]
    %v191 = vld [vmem:[%s1 + $0x1b8] sm:$0xf]
    %v192 = vld [vmem:[%s1 + $0x1bc] sm:$0xf]
    %v193 = vld [vmem:[%s1 + $0x1c0] sm:$0xf]
    %v194 = vld [vmem:[%s1 + $0x1c4] sm:$0xf]
    %v195 = vld [vmem:[%s1 + $0x1c8] sm:$0xf]
    %v196 = vld [vmem:[%s1 + $0x1cc] sm:$0xf]
    %v197 = vld [vmem:[%s1 + $0x1d0] sm:$0xf]
    %v198 = vld [vmem:[%s1 + $0x1d4] sm:$0xf]
    %v199 = vld [vmem:[%s1 + $0x1d8] sm:$0xf]
    %v200 = vld [vmem:[%s1 + $0x1dc] sm:$0xf]
    %v201 = vld [vmem:[%s1 + $0x1e0] sm:$0xf]
    %v202 = vld [vmem:[%s1 + $0x1e4] sm:$0xf]
    %v203 = vld [vmem:[%s1 + $0x1e8] sm:$0xf]
    %v204 = vld [vmem:[%s1 + $0x1ec] sm:$0xf]
    %v205 = vld [vmem:[%s1 + $0x1f0] sm:$0xf]
    %v206 = vld [vmem:[%s1 + $0x1f4] sm:$0xf]
    %v207 = vld [vmem:[%s1 + $0x1f8] sm:$0xf]
    %v208 = vld [vmem:[%s1 + $0x1fc] sm:$0xf]
    %v209 = vld [vmem:[#allocation2] sm:$0x3]
    %v338 = vunpack.c.l.b16 %v81
    %v339 = vunpack.c.l.b16 %v82
    %v340 = vunpack.c.l.b16 %v83
    %v341 = vunpack.c.l.b16 %v84
    %v342 = vunpack.c.l.b16 %v85
    %v343 = vunpack.c.l.b16 %v86
    %v344 = vunpack.c.l.b16 %v87
    %v345 = vunpack.c.l.b16 %v88
    %v346 = vunpack.c.l.b16 %v89
    %v347 = vunpack.c.l.b16 %v90
    %v348 = vunpack.c.l.b16 %v91
    %v349 = vunpack.c.l.b16 %v92
    %v350 = vunpack.c.l.b16 %v93
    %v351 = vunpack.c.l.b16 %v94
    %v352 = vunpack.c.l.b16 %v95
    %v353 = vunpack.c.l.b16 %v96
    %v354 = vunpack.c.l.b16 %v97
    %v355 = vunpack.c.l.b16 %v98
    %v356 = vunpack.c.l.b16 %v99
    %v357 = vunpack.c.l.b16 %v100
    %v358 = vunpack.c.l.b16 %v101
    %v359 = vunpack.c.l.b16 %v102
    %v360 = vunpack.c.l.b16 %v103
    %v361 = vunpack.c.l.b16 %v104
    %v362 = vunpack.c.l.b16 %v105
    %v363 = vunpack.c.l.b16 %v106
    %v364 = vunpack.c.l.b16 %v107
    %v365 = vunpack.c.l.b16 %v108
    %v366 = vunpack.c.l.b16 %v109
    %v367 = vunpack.c.l.b16 %v110
    %v368 = vunpack.c.l.b16 %v111
    %v369 = vunpack.c.l.b16 %v112
    %v370 = vunpack.c.l.b16 %v113
    %v371 = vunpack.c.l.b16 %v114
    %v372 = vunpack.c.l.b16 %v115
    %v373 = vunpack.c.l.b16 %v116
    %v374 = vunpack.c.l.b16 %v117
    %v375 = vunpack.c.l.b16 %v118
    %v376 = vunpack.c.l.b16 %v119
    %v377 = vunpack.c.l.b16 %v120
    %v378 = vunpack.c.l.b16 %v121
    %v379 = vunpack.c.l.b16 %v122
    %v380 = vunpack.c.l.b16 %v123
    %v381 = vunpack.c.l.b16 %v124
    %v382 = vunpack.c.l.b16 %v125
    %v383 = vunpack.c.l.b16 %v126
    %v384 = vunpack.c.l.b16 %v127
    %v385 = vunpack.c.l.b16 %v128
    %v386 = vunpack.c.l.b16 %v129
    %v387 = vunpack.c.l.b16 %v130
    %v388 = vunpack.c.l.b16 %v131
    %v389 = vunpack.c.l.b16 %v132
    %v390 = vunpack.c.l.b16 %v133
    %v391 = vunpack.c.l.b16 %v134
    %v392 = vunpack.c.l.b16 %v135
    %v393 = vunpack.c.l.b16 %v136
    %v394 = vunpack.c.l.b16 %v137
    %v395 = vunpack.c.l.b16 %v138
    %v396 = vunpack.c.l.b16 %v139
    %v397 = vunpack.c.l.b16 %v140
    %v398 = vunpack.c.l.b16 %v141
    %v399 = vunpack.c.l.b16 %v142
    %v400 = vunpack.c.l.b16 %v143
    %v401 = vunpack.c.l.b16 %v144
    %v402 = vunpack.c.l.b16 %v145
    %v403 = vunpack.c.l.b16 %v146
    %v404 = vunpack.c.l.b16 %v147
    %v405 = vunpack.c.l.b16 %v148
    %v406 = vunpack.c.l.b16 %v149
    %v407 = vunpack.c.l.b16 %v150
    %v408 = vunpack.c.l.b16 %v151
    %v409 = vunpack.c.l.b16 %v152
    %v410 = vunpack.c.l.b16 %v153
    %v411 = vunpack.c.l.b16 %v154
    %v412 = vunpack.c.l.b16 %v155
    %v413 = vunpack.c.l.b16 %v156
    %v414 = vunpack.c.l.b16 %v157
    %v415 = vunpack.c.l.b16 %v158
    %v416 = vunpack.c.l.b16 %v159
    %v417 = vunpack.c.l.b16 %v160
    %v418 = vunpack.c.l.b16 %v161
    %v419 = vunpack.c.l.b16 %v162
    %v420 = vunpack.c.l.b16 %v163
    %v421 = vunpack.c.l.b16 %v164
    %v422 = vunpack.c.l.b16 %v165
    %v423 = vunpack.c.l.b16 %v166
    %v424 = vunpack.c.l.b16 %v167
    %v425 = vunpack.c.l.b16 %v168
    %v426 = vunpack.c.l.b16 %v169
    %v427 = vunpack.c.l.b16 %v170
    %v428 = vunpack.c.l.b16 %v171
    %v429 = vunpack.c.l.b16 %v172
    %v430 = vunpack.c.l.b16 %v173
    %v431 = vunpack.c.l.b16 %v174
    %v432 = vunpack.c.l.b16 %v175
    %v433 = vunpack.c.l.b16 %v176
    %v434 = vunpack.c.l.b16 %v177
    %v435 = vunpack.c.l.b16 %v178
    %v436 = vunpack.c.l.b16 %v179
    %v437 = vunpack.c.l.b16 %v180
    %v438 = vunpack.c.l.b16 %v181
    %v439 = vunpack.c.l.b16 %v182
    %v440 = vunpack.c.l.b16 %v183
    %v441 = vunpack.c.l.b16 %v184
    %v442 = vunpack.c.l.b16 %v185
    %v443 = vunpack.c.l.b16 %v186
    %v444 = vunpack.c.l.b16 %v187
    %v445 = vunpack.c.l.b16 %v188
    %v446 = vunpack.c.l.b16 %v189
    %v447 = vunpack.c.l.b16 %v190
    %v448 = vunpack.c.l.b16 %v191
    %v449 = vunpack.c.l.b16 %v192
    %v450 = vunpack.c.l.b16 %v193
    %v451 = vunpack.c.l.b16 %v194
    %v452 = vunpack.c.l.b16 %v195
    %v453 = vunpack.c.l.b16 %v196
    %v454 = vunpack.c.l.b16 %v197
    %v455 = vunpack.c.l.b16 %v198
    %v456 = vunpack.c.l.b16 %v199
    %v457 = vunpack.c.l.b16 %v200
    %v458 = vunpack.c.l.b16 %v201
    %v459 = vunpack.c.l.b16 %v202
    %v460 = vunpack.c.l.b16 %v203
    %v461 = vunpack.c.l.b16 %v204
    %v462 = vunpack.c.l.b16 %v205
    %v463 = vunpack.c.l.b16 %v206
    %v464 = vunpack.c.l.b16 %v207
    %v465 = vunpack.c.l.b16 %v208
    %v466 = vpack.c.b16 %v339, %v338
    %v467 = vpack.c.b16 %v341, %v340
    %v468 = vpack.c.b16 %v343, %v342
    %v469 = vpack.c.b16 %v345, %v344
    %v470 = vpack.c.b16 %v347, %v346
    %v471 = vpack.c.b16 %v349, %v348
    %v472 = vpack.c.b16 %v351, %v350
    %v473 = vpack.c.b16 %v353, %v352
    %v474 = vpack.c.b16 %v355, %v354
    %v475 = vpack.c.b16 %v357, %v356
    %v476 = vpack.c.b16 %v359, %v358
    %v477 = vpack.c.b16 %v361, %v360
    %v478 = vpack.c.b16 %v363, %v362
    %v479 = vpack.c.b16 %v365, %v364
    %v480 = vpack.c.b16 %v367, %v366
    %v481 = vpack.c.b16 %v369, %v368
    %v482 = vpack.c.b16 %v371, %v370
    %v483 = vpack.c.b16 %v373, %v372
    %v484 = vpack.c.b16 %v375, %v374
    %v485 = vpack.c.b16 %v377, %v376
    %v486 = vpack.c.b16 %v379, %v378
    %v487 = vpack.c.b16 %v381, %v380
    %v488 = vpack.c.b16 %v383, %v382
    %v489 = vpack.c.b16 %v385, %v384
    %v490 = vpack.c.b16 %v387, %v386
    %v491 = vpack.c.b16 %v389, %v388
    %v492 = vpack.c.b16 %v391, %v390
    %v493 = vpack.c.b16 %v393, %v392
    %v494 = vpack.c.b16 %v395, %v394
    %v495 = vpack.c.b16 %v397, %v396
    %v496 = vpack.c.b16 %v399, %v398
    %v497 = vpack.c.b16 %v401, %v400
    %v498 = vpack.c.b16 %v403, %v402
    %v499 = vpack.c.b16 %v405, %v404
    %v500 = vpack.c.b16 %v407, %v406
    %v501 = vpack.c.b16 %v409, %v408
    %v502 = vpack.c.b16 %v411, %v410
    %v503 = vpack.c.b16 %v413, %v412
    %v504 = vpack.c.b16 %v415, %v414
    %v505 = vpack.c.b16 %v417, %v416
    %v506 = vpack.c.b16 %v419, %v418
    %v507 = vpack.c.b16 %v421, %v420
    %v508 = vpack.c.b16 %v423, %v422
    %v509 = vpack.c.b16 %v425, %v424
    %v510 = vpack.c.b16 %v427, %v426
    %v511 = vpack.c.b16 %v429, %v428
    %v512 = vpack.c.b16 %v431, %v430
    %v513 = vpack.c.b16 %v433, %v432
    %v514 = vpack.c.b16 %v435, %v434
    %v515 = vpack.c.b16 %v437, %v436
    %v516 = vpack.c.b16 %v439, %v438
    %v517 = vpack.c.b16 %v441, %v440
    %v518 = vpack.c.b16 %v443, %v442
    %v519 = vpack.c.b16 %v445, %v444
    %v520 = vpack.c.b16 %v447, %v446
    %v521 = vpack.c.b16 %v449, %v448
    %v522 = vpack.c.b16 %v451, %v450
    %v523 = vpack.c.b16 %v453, %v452
    %v524 = vpack.c.b16 %v455, %v454
    %v525 = vpack.c.b16 %v457, %v456
    %v526 = vpack.c.b16 %v459, %v458
    %v527 = vpack.c.b16 %v461, %v460
    %v528 = vpack.c.b16 %v463, %v462
    %v529 = vpack.c.b16 %v465, %v464
    %594 = vmatprep.subr.bf16.mxu0 0
    %595 = vmatpush1.bf16.msra.mxu0 %v473
    %596 = vmatprep.subr.bf16.mxu0 0
    %597 = vmatpush1.bf16.msra.mxu0 %v472
    %598 = vmatprep.subr.bf16.mxu0 0
    %599 = vmatpush1.bf16.msra.mxu0 %v471
    %600 = vmatprep.subr.bf16.mxu0 0
    %601 = vmatpush1.bf16.msra.mxu0 %v470
    %602 = vmatprep.subr.bf16.mxu0 0
    %603 = vmatpush1.bf16.msra.mxu0 %v469
    %604 = vmatprep.subr.bf16.mxu0 0
    %605 = vmatpush1.bf16.msra.mxu0 %v468
    %606 = vmatprep.subr.bf16.mxu0 0
    %607 = vmatpush1.bf16.msra.mxu0 %v467
    %608 = vmatprep.subr.bf16.mxu0 0
    %609 = vmatpush1.bf16.msra.mxu0 %v466
    %610 = vmatprep.subr.bf16.mxu0 0
    %611 = vmatpush2.bf16.msra.mxu0 %v481
    %612 = vmatprep.subr.bf16.mxu0 0
    %613 = vmatpush2.bf16.msra.mxu0 %v480
    %614 = vmatprep.subr.bf16.mxu0 0
    %615 = vmatpush2.bf16.msra.mxu0 %v479
    %616 = vmatprep.subr.bf16.mxu0 0
    %617 = vmatpush2.bf16.msra.mxu0 %v478
    %618 = vmatprep.subr.bf16.mxu0 0
    %619 = vmatpush2.bf16.msra.mxu0 %v477
    %620 = vmatprep.subr.bf16.mxu0 0
    %621 = vmatpush2.bf16.msra.mxu0 %v476
    %622 = vmatprep.subr.bf16.mxu0 0
    %623 = vmatpush2.bf16.msra.mxu0 %v475
    %624 = vmatprep.subr.bf16.mxu0 0
    %625 = vmatpush2.bf16.msra.mxu0 %v474
    %626 = vmatprep.mubr.bf16.mxu0 %v74
    %627 = vmatmul.mubr.bf16.gmra.mxu0 %v73
    %v628 = vpop.f32.mrf.mxu0
    %v629 = vadd.f32 0.0, %v628
    %v630 = vpop.f32.mrf.mxu0
    %v631 = vpop.f32.mrf.mxu0
    %v632 = vpop.f32.mrf.mxu0
    %633 = vdwg.mxu0
    %634 = vmatprep.subr.bf16.mxu0 0
    %635 = vmatpush1.bf16.msra.mxu0 %v489
    %636 = vmatprep.subr.bf16.mxu0 0
    %637 = vmatpush1.bf16.msra.mxu0 %v488
    %638 = vmatprep.subr.bf16.mxu0 0
    %639 = vmatpush1.bf16.msra.mxu0 %v487
    %640 = vmatprep.subr.bf16.mxu0 0
    %641 = vmatpush1.bf16.msra.mxu0 %v486
    %642 = vmatprep.subr.bf16.mxu0 0
    %643 = vmatpush1.bf16.msra.mxu0 %v485
    %644 = vmatprep.subr.bf16.mxu0 0
    %645 = vmatpush1.bf16.msra.mxu0 %v484
    %646 = vmatprep.subr.bf16.mxu0 0
    %647 = vmatpush1.bf16.msra.mxu0 %v483
    %648 = vmatprep.subr.bf16.mxu0 0
    %649 = vmatpush1.bf16.msra.mxu0 %v482
    %650 = vmatprep.subr.bf16.mxu0 0
    %651 = vmatpush2.bf16.msra.mxu0 %v497
    %652 = vmatprep.subr.bf16.mxu0 0
    %653 = vmatpush2.bf16.msra.mxu0 %v496
    %654 = vmatprep.subr.bf16.mxu0 0
    %655 = vmatpush2.bf16.msra.mxu0 %v495
    %656 = vmatprep.subr.bf16.mxu0 0
    %657 = vmatpush2.bf16.msra.mxu0 %v494
    %658 = vmatprep.subr.bf16.mxu0 0
    %659 = vmatpush2.bf16.msra.mxu0 %v493
    %660 = vmatprep.subr.bf16.mxu0 0
    %661 = vmatpush2.bf16.msra.mxu0 %v492
    %662 = vmatprep.subr.bf16.mxu0 0
    %663 = vmatpush2.bf16.msra.mxu0 %v491
    %664 = vmatprep.subr.bf16.mxu0 0
    %665 = vmatpush2.bf16.msra.mxu0 %v490
    %666 = vmatprep.mubr.bf16.mxu0 %v76
    %667 = vmatmul.mubr.bf16.gmra.mxu0 %v75
    %v668 = vpop.f32.mrf.mxu0
    %v669 = vadd.f32 %v629, %v668
    %v670 = vpop.f32.mrf.mxu0
    %v671 = vpop.f32.mrf.mxu0
    %v672 = vpop.f32.mrf.mxu0
    %673 = vdwg.mxu0
    %674 = vmatprep.subr.bf16.mxu0 0
    %675 = vmatpush1.bf16.msra.mxu0 %v505
    %676 = vmatprep.subr.bf16.mxu0 0
    %677 = vmatpush1.bf16.msra.mxu0 %v504
    %678 = vmatprep.subr.bf16.mxu0 0
    %679 = vmatpush1.bf16.msra.mxu0 %v503
    %680 = vmatprep.subr.bf16.mxu0 0
    %681 = vmatpush1.bf16.msra.mxu0 %v502
    %682 = vmatprep.subr.bf16.mxu0 0
    %683 = vmatpush1.bf16.msra.mxu0 %v501
    %684 = vmatprep.subr.bf16.mxu0 0
    %685 = vmatpush1.bf16.msra.mxu0 %v500
    %686 = vmatprep.subr.bf16.mxu0 0
    %687 = vmatpush1.bf16.msra.mxu0 %v499
    %688 = vmatprep.subr.bf16.mxu0 0
    %689 = vmatpush1.bf16.msra.mxu0 %v498
    %690 = vmatprep.subr.bf16.mxu0 0
    %691 = vmatpush2.bf16.msra.mxu0 %v513
    %692 = vmatprep.subr.bf16.mxu0 0
    %693 = vmatpush2.bf16.msra.mxu0 %v512
    %694 = vmatprep.subr.bf16.mxu0 0
    %695 = vmatpush2.bf16.msra.mxu0 %v511
    %696 = vmatprep.subr.bf16.mxu0 0
    %697 = vmatpush2.bf16.msra.mxu0 %v510
    %698 = vmatprep.subr.bf16.mxu0 0
    %699 = vmatpush2.bf16.msra.mxu0 %v509
    %700 = vmatprep.subr.bf16.mxu0 0
    %701 = vmatpush2.bf16.msra.mxu0 %v508
    %702 = vmatprep.subr.bf16.mxu0 0
    %703 = vmatpush2.bf16.msra.mxu0 %v507
    %704 = vmatprep.subr.bf16.mxu0 0
    %705 = vmatpush2.bf16.msra.mxu0 %v506
    %706 = vmatprep.mubr.bf16.mxu0 %v78
    %707 = vmatmul.mubr.bf16.gmra.mxu0 %v77
    %v708 = vpop.f32.mrf.mxu0
    %v709 = vadd.f32 %v669, %v708
    %v710 = vpop.f32.mrf.mxu0
    %v711 = vpop.f32.mrf.mxu0
    %v712 = vpop.f32.mrf.mxu0
    %713 = vdwg.mxu0
    %714 = vmatprep.subr.bf16.mxu0 0
    %715 = vmatpush1.bf16.msra.mxu0 %v521
    %716 = vmatprep.subr.bf16.mxu0 0
    %717 = vmatpush1.bf16.msra.mxu0 %v520
    %718 = vmatprep.subr.bf16.mxu0 0
    %719 = vmatpush1.bf16.msra.mxu0 %v519
    %720 = vmatprep.subr.bf16.mxu0 0
    %721 = vmatpush1.bf16.msra.mxu0 %v518
    %722 = vmatprep.subr.bf16.mxu0 0
    %723 = vmatpush1.bf16.msra.mxu0 %v517
    %724 = vmatprep.subr.bf16.mxu0 0
    %725 = vmatpush1.bf16.msra.mxu0 %v516
    %726 = vmatprep.subr.bf16.mxu0 0
    %727 = vmatpush1.bf16.msra.mxu0 %v515
    %728 = vmatprep.subr.bf16.mxu0 0
    %729 = vmatpush1.bf16.msra.mxu0 %v514
    %730 = vmatprep.subr.bf16.mxu0 0
    %731 = vmatpush2.bf16.msra.mxu0 %v529
    %732 = vmatprep.subr.bf16.mxu0 0
    %733 = vmatpush2.bf16.msra.mxu0 %v528
    %734 = vmatprep.subr.bf16.mxu0 0
    %735 = vmatpush2.bf16.msra.mxu0 %v527
    %736 = vmatprep.subr.bf16.mxu0 0
    %737 = vmatpush2.bf16.msra.mxu0 %v526
    %738 = vmatprep.subr.bf16.mxu0 0
    %739 = vmatpush2.bf16.msra.mxu0 %v525
    %740 = vmatprep.subr.bf16.mxu0 0
    %741 = vmatpush2.bf16.msra.mxu0 %v524
    %742 = vmatprep.subr.bf16.mxu0 0
    %743 = vmatpush2.bf16.msra.mxu0 %v523
    %744 = vmatprep.subr.bf16.mxu0 0
    %745 = vmatpush2.bf16.msra.mxu0 %v522
    %746 = vmatprep.mubr.bf16.mxu0 %v80
    %747 = vmatmul.mubr.bf16.gmra.mxu0 %v79
    %v748 = vpop.f32.mrf.mxu0
    %v749 = vadd.f32 %v709, %v748
    %v750 = vpop.f32.mrf.mxu0
    %v751 = vpop.f32.mrf.mxu0
    %v752 = vpop.f32.mrf.mxu0
    %753 = vdwg.mxu0
    %v754 = vadd.f32 %v209, %v749
    %755 = vst [vmem:[#allocation2] sm:$0x3] %v754
    // Predicated region
    $region26: #{encoder_with_head.1} parent=1 // pred_check
      %p756 = pneg %p22
    $region27: #{encoder_with_head.1} parent=1 // pred_check_branch
      %758 = sbr.rel (%p756) target = $region29
    $region28: #{encoder_with_head.1} parent=1 // pred_region
      %v759 = vld [vmem:[#allocation2] sm:$0x3]
      %v760 = vld [vmem:[%s2] sm:$0x1]
      %v762 = vlaneseq
      %v763 = vshrl.u32 %v762, 7
      %v764 = vsub.s32 0, %v763
      %v765 = vrot.slane %v760, %v764
      %v767 = vadd.f32 %v759, %v765
      %v768 = vmax.f32 %v767, 0.0
      %v769 = vld [vmem:[%s3] sm:$0xff]
      %v770 = vld [vmem:[%s3 + $0x8] sm:$0xff]
      %v771 = vld [vmem:[%s3 + $0x10] sm:$0xff]
      %v772 = vld [vmem:[%s3 + $0x18] sm:$0xff]
      %v773 = vld [vmem:[%s3 + $0x20] sm:$0xff]
      %v774 = vld [vmem:[%s3 + $0x28] sm:$0xff]
      %v775 = vld [vmem:[%s3 + $0x30] sm:$0xff]
      %v776 = vld [vmem:[%s3 + $0x38] sm:$0xff]
      %v777 = vld [vmem:[%s3 + $0x40] sm:$0xff]
      %v778 = vld [vmem:[%s3 + $0x48] sm:$0xff]
      %v779 = vld [vmem:[%s3 + $0x50] sm:$0xff]
      %v780 = vld [vmem:[%s3 + $0x58] sm:$0xff]
      %v781 = vld [vmem:[%s3 + $0x60] sm:$0xff]
      %v782 = vld [vmem:[%s3 + $0x68] sm:$0xff]
      %v783 = vld [vmem:[%s3 + $0x70] sm:$0xff]
      %v784 = vld [vmem:[%s3 + $0x78] sm:$0xff]
      %v785 = vld [vmem:[%s4] sm:$0x1]
      %v787 = vlaneseq
      %v788 = vshrl.u32 %v787, 7
      %v789 = vsub.s32 0, %v788
      %v790 = vrot.slane %v785, %v789
      %792 = vmatprep.subr.mxu0 0.0
      %793 = vmatpush1.msra.mxu0 %v784
      %794 = vmatprep.subr.mxu0 0.0
      %795 = vmatpush1.msra.mxu0 %v783
      %796 = vmatprep.subr.mxu0 0.0
      %797 = vmatpush1.msra.mxu0 %v782
      %798 = vmatprep.subr.mxu0 0.0
      %799 = vmatpush1.msra.mxu0 %v781
      %800 = vmatprep.subr.mxu0 0.0
      %801 = vmatpush1.msra.mxu0 %v780
      %802 = vmatprep.subr.mxu0 0.0
      %803 = vmatpush1.msra.mxu0 %v779
      %804 = vmatprep.subr.mxu0 0.0
      %805 = vmatpush1.msra.mxu0 %v778
      %806 = vmatprep.subr.mxu0 0.0
      %807 = vmatpush1.msra.mxu0 %v777
      %808 = vmatprep.subr.mxu0 0.0
      %809 = vmatpush1.msra.mxu0 %v776
      %810 = vmatprep.subr.mxu0 0.0
      %811 = vmatpush1.msra.mxu0 %v775
      %812 = vmatprep.subr.mxu0 0.0
      %813 = vmatpush1.msra.mxu0 %v774
      %814 = vmatprep.subr.mxu0 0.0
      %815 = vmatpush1.msra.mxu0 %v773
      %816 = vmatprep.subr.mxu0 0.0
      %817 = vmatpush1.msra.mxu0 %v772
      %818 = vmatprep.subr.mxu0 0.0
      %819 = vmatpush1.msra.mxu0 %v771
      %820 = vmatprep.subr.mxu0 0.0
      %821 = vmatpush1.msra.mxu0 %v770
      %822 = vmatprep.subr.mxu0 0.0
      %823 = vmatpush1.msra.mxu0 %v769
      %824 = vmatprep.subr.mxu0 0.0
      %825 = vmatpush2.msra.mxu0 0.0
      %826 = vmatprep.subr.mxu0 0.0
      %827 = vmatpush2.msra.mxu0 0.0
      %828 = vmatprep.subr.mxu0 0.0
      %829 = vmatpush2.msra.mxu0 0.0
      %830 = vmatprep.subr.mxu0 0.0
      %831 = vmatpush2.msra.mxu0 0.0
      %832 = vmatprep.subr.mxu0 0.0
      %833 = vmatpush2.msra.mxu0 0.0
      %834 = vmatprep.subr.mxu0 0.0
      %835 = vmatpush2.msra.mxu0 0.0
      %836 = vmatprep.subr.mxu0 0.0
      %837 = vmatpush2.msra.mxu0 0.0
      %838 = vmatprep.subr.mxu0 0.0
      %839 = vmatpush2.msra.mxu0 0.0
      %840 = vmatprep.subr.mxu0 0.0
      %841 = vmatpush2.msra.mxu0 0.0
      %842 = vmatprep.subr.mxu0 0.0
      %843 = vmatpush2.msra.mxu0 0.0
      %844 = vmatprep.subr.mxu0 0.0
      %845 = vmatpush2.msra.mxu0 0.0
      %846 = vmatprep.subr.mxu0 0.0
      %847 = vmatpush2.msra.mxu0 0.0
      %848 = vmatprep.subr.mxu0 0.0
      %849 = vmatpush2.msra.mxu0 0.0
      %850 = vmatprep.subr.mxu0 0.0
      %851 = vmatpush2.msra.mxu0 0.0
      %852 = vmatprep.subr.mxu0 0.0
      %853 = vmatpush2.msra.mxu0 0.0
      %854 = vmatprep.subr.mxu0 0.0
      %855 = vmatpush2.msra.mxu0 0.0
      %856 = vmatprep.mubr.f32.mxu0 0.0
      %857 = vmatmul.mubr.f32.gmra.mxu0 %v768
      %v858 = vpop.f32.mrf.mxu0
      %v859 = vadd.f32 %v790, %v858
      %v860 = vpop.f32.mrf.mxu0
      %861 = vdwg.mxu0
      %862 = vst [vmem:[#allocation3] sm:$0x3] %v859
    $region29: #{encoder_with_head.1} parent=1 // pred_fallthru
      _
    // Predicated region
    $region30: #{encoder_with_head.1} parent=1 // pred_check
      _
    $region31: #{encoder_with_head.1} parent=1 // pred_check_branch
      %864 = sbr.rel (0) target = $region33
    $region32: #{encoder_with_head.1} parent=1 // pred_region
      %s866 = ssub.s32 32, 32
      %867 = vsyncadd [#allocation4], %s866
      %s869 = sshll.u32 [#allocation3], 4
      %s870 = int_to_ptr.vmem [resolvable:$true] %s869
      %872 = dma.vmem_to_hbm [thread:$0]  %s870, 32, %s5, [#allocation4]
    $region33: #{encoder_with_head.1} parent=1 // pred_fallthru
      _
    // Predicated region
    $region34: #{encoder_with_head.1} parent=1 // pred_check
      _
    $region35: #{encoder_with_head.1} parent=1 // pred_check_branch
      %874 = sbr.rel (0) target = $region37
    $region36: #{encoder_with_head.1} parent=1 // pred_region
      %875 = dma.done [#allocation4], 32
    $region37: #{encoder_with_head.1} parent=1 // pred_fallthru
      _
    %876 = vsyncpa [#allocation4], 1

// kernel: encoder_with_head.1
$region0: #{encoder_with_head.1}
  #allocation0 [shape = 'u32[]', space=smem, size = 0x4, offset = 0x4, fixed_abs, tag = 'smem constant byte address 0x4 - core index']
  #allocation1 [shape = 'u32[144,128]{1,0:T(1,128)}', space=vmem, size = 0x12000, scoped, tag = 'internal scratch']
  #allocation2 [shape = 'f32[2,128]{1,0:T(2,128)}', space=vmem, size = 0x400, scoped, tag = 'scratch operand']
  %s0 = inlined_call_operand.vmem [shape: f32[2,1024], index: 0, kind: input, shape index: {}]
  %s1 = inlined_call_operand.vmem [shape: bf16[1024,128], index: 1, kind: input, shape index: {}]
  %s2 = inlined_call_operand.vmem [shape: f32[1,128], index: 2, kind: input, shape index: {}]
  %s3 = inlined_call_operand.vmem [shape: f32[128,128], index: 3, kind: input, shape index: {}]
  %s4 = inlined_call_operand.vmem [shape: f32[1,128], index: 4, kind: input, shape index: {}]
  %s5 = inlined_call_operand.hbm [shape: f32[2,128], index: 5, kind: output, shape index: {}]
  %s6 = sld [smem:[#allocation0]]
  $region38: #{encoder_with_head.1} parent=0
    _
  %s8 = ssub.s32 1, %s6
  %s9 = scalar_select 0, %s8, %s6
  $region1: #{encoder_with_head.1} parent=0
    #allocation3 [shape = 'u8[1024]{0}', space=vmem, size = 0x400, scoped, tag = 'output window, operand 0, single buffered']
    #allocation4 [shape = 's32[1]{0}', space=sflag, size = 0x4, scoped, tag = 'scoped memory for encoder_with_head.1']
    %10 = vsyncpa [#allocation4], 0
    // Predicated region
    $region2: #{encoder_with_head.1} parent=1 // pred_check
      _
    $region3: #{encoder_with_head.1} parent=1 // pred_check_branch
      %12 = sbr.rel (0) target = $region5
    $region4: #{encoder_with_head.1} parent=1 // pred_region
      _
    $region5: #{encoder_with_head.1} parent=1 // pred_fallthru
      _
    // Predicated region
    $region6: #{encoder_with_head.1} parent=1 // pred_check
      _
    $region7: #{encoder_with_head.1} parent=1 // pred_check_branch
      %14 = sbr.rel (0) target = $region9
    $region8: #{encoder_with_head.1} parent=1 // pred_region
      _
    $region9: #{encoder_with_head.1} parent=1 // pred_fallthru
      _
    // Predicated region
    $region10: #{encoder_with_head.1} parent=1 // pred_check
      _
    $region11: #{encoder_with_head.1} parent=1 // pred_check_branch
      %16 = sbr.rel (0) target = $region13
    $region12: #{encoder_with_head.1} parent=1 // pred_region
      _
    $region13: #{encoder_with_head.1} parent=1 // pred_fallthru
      _
    // Predicated region
    $region14: #{encoder_with_head.1} parent=1 // pred_check
      _
    $region15: #{encoder_with_head.1} parent=1 // pred_check_branch
      %18 = sbr.rel (0) target = $region17
    $region16: #{encoder_with_head.1} parent=1 // pred_region
      _
    $region17: #{encoder_with_head.1} parent=1 // pred_fallthru
      _
    // Predicated region
    $region18: #{encoder_with_head.1} parent=1 // pred_check
      _
    $region19: #{encoder_with_head.1} parent=1 // pred_check_branch
      %20 = sbr.rel (0) target = $region21
    $region20: #{encoder_with_head.1} parent=1 // pred_region
      _
    $region21: #{encoder_with_head.1} parent=1 // pred_fallthru
      _
    %p22 = scmp.eq.s32.totalorder 0, 0
    // Predicated region
    $region22: #{encoder_with_head.1} parent=1 // pred_check
      %p23 = pneg %p22
    $region23: #{encoder_with_head.1} parent=1 // pred_check_branch
      %25 = sbr.rel (%p23) target = $region25
    $region24: #{encoder_with_head.1} parent=1 // pred_region
      %26 = vst [vmem:[#allocation2] sm:$0x3] 0.0
    $region25: #{encoder_with_head.1} parent=1 // pred_fallthru
      _
    %v27 = vld [vmem:[%s0] sm:$0xff]
    %v28 = vld [vmem:[%s0 + $0x8] sm:$0xff]
    %v31 = vcombine.high %v27, %v27
    %v33 = vunpack.c.l.s4 1983009808
    %v34 = vunpack.c.0.s8 %v33
    %v35 = vlaneseq
    %v36 = vshrl.u32 %v35, 7
    %v37 = vsub.s32 %v34, %v36
    %v38 = vrot.slane %v27, %v37
    %v40 = vunpack.c.l.s4 1983009808
    %v41 = vunpack.c.0.s8 %v40
    %v42 = vlaneseq
    %v43 = vshrl.u32 %v42, 7
    %v44 = vsub.s32 %v41, %v43
    %v45 = vrot.slane %v31, %v44
    %v46 = vcombine.high %v38, %v38
    %v47 = vcombine.high %v45, %v45
    %v48 = vcombine.high %v28, %v28
    %v50 = vunpack.c.l.s4 1983009808
    %v51 = vunpack.c.0.s8 %v50
    %v52 = vlaneseq
    %v53 = vshrl.u32 %v52, 7
    %v54 = vsub.s32 %v51, %v53
    %v55 = vrot.slane %v28, %v54
    %v57 = vunpack.c.l.s4 1983009808
    %v58 = vunpack.c.0.s8 %v57
    %v59 = vlaneseq
    %v60 = vshrl.u32 %v59, 7
    %v61 = vsub.s32 %v58, %v60
    %v62 = vrot.slane %v48, %v61
    %v63 = vcombine.high %v55, %v55
    %v64 = vcombine.high %v62, %v62
    %v73 = vpack.c.bf16 %v38, %v38
    %v74 = vpack.c.bf16 %v46, %v46
    %v75 = vpack.c.bf16 %v45, %v45
    %v76 = vpack.c.bf16 %v47, %v47
    %v77 = vpack.c.bf16 %v55, %v55
    %v78 = vpack.c.bf16 %v63, %v63
    %v79 = vpack.c.bf16 %v62, %v62
    %v80 = vpack.c.bf16 %v64, %v64
    %v81 = vld [vmem:[%s1] sm:$0xf]
    %v82 = vld [vmem:[%s1 + $0x4] sm:$0xf]
    %v83 = vld [vmem:[%s1 + $0x8] sm:$0xf]
    %v84 = vld [vmem:[%s1 + $0xc] sm:$0xf]
    %v85 = vld [vmem:[%s1 + $0x10] sm:$0xf]
    %v86 = vld [vmem:[%s1 + $0x14] sm:$0xf]
    %v87 = vld [vmem:[%s1 + $0x18] sm:$0xf]
    %v88 = vld [vmem:[%s1 + $0x1c] sm:$0xf]
    %v89 = vld [vmem:[%s1 + $0x20] sm:$0xf]
    %v90 = vld [vmem:[%s1 + $0x24] sm:$0xf]
    %v91 = vld [vmem:[%s1 + $0x28] sm:$0xf]
    %v92 = vld [vmem:[%s1 + $0x2c] sm:$0xf]
    %v93 = vld [vmem:[%s1 + $0x30] sm:$0xf]
    %v94 = vld [vmem:[%s1 + $0x34] sm:$0xf]
    %v95 = vld [vmem:[%s1 + $0x38] sm:$0xf]
    %v96 = vld [vmem:[%s1 + $0x3c] sm:$0xf]
    %v97 = vld [vmem:[%s1 + $0x40] sm:$0xf]
    %v98 = vld [vmem:[%s1 + $0x44] sm:$0xf]
    %v99 = vld [vmem:[%s1 + $0x48] sm:$0xf]
    %v100 = vld [vmem:[%s1 + $0x4c] sm:$0xf]
    %v101 = vld [vmem:[%s1 + $0x50] sm:$0xf]
    %v102 = vld [vmem:[%s1 + $0x54] sm:$0xf]
    %v103 = vld [vmem:[%s1 + $0x58] sm:$0xf]
    %v104 = vld [vmem:[%s1 + $0x5c] sm:$0xf]
    %v105 = vld [vmem:[%s1 + $0x60] sm:$0xf]
    %v106 = vld [vmem:[%s1 + $0x64] sm:$0xf]
    %v107 = vld [vmem:[%s1 + $0x68] sm:$0xf]
    %v108 = vld [vmem:[%s1 + $0x6c] sm:$0xf]
    %v109 = vld [vmem:[%s1 + $0x70] sm:$0xf]
    %v110 = vld [vmem:[%s1 + $0x74] sm:$0xf]
    %v111 = vld [vmem:[%s1 + $0x78] sm:$0xf]
    %v112 = vld [vmem:[%s1 + $0x7c] sm:$0xf]
    %v113 = vld [vmem:[%s1 + $0x80] sm:$0xf]
    %v114 = vld [vmem:[%s1 + $0x84] sm:$0xf]
    %v115 = vld [vmem:[%s1 + $0x88] sm:$0xf]
    %v116 = vld [vmem:[%s1 + $0x8c] sm:$0xf]
    %v117 = vld [vmem:[%s1 + $0x90] sm:$0xf]
    %v118 = vld [vmem:[%s1 + $0x94] sm:$0xf]
    %v119 = vld [vmem:[%s1 + $0x98] sm:$0xf]
    %v120 = vld [vmem:[%s1 + $0x9c] sm:$0xf]
    %v121 = vld [vmem:[%s1 + $0xa0] sm:$0xf]
    %v122 = vld [vmem:[%s1 + $0xa4] sm:$0xf]
    %v123 = vld [vmem:[%s1 + $0xa8] sm:$0xf]
    %v124 = vld [vmem:[%s1 + $0xac] sm:$0xf]
    %v125 = vld [vmem:[%s1 + $0xb0] sm:$0xf]
    %v126 = vld [vmem:[%s1 + $0xb4] sm:$0xf]
    %v127 = vld [vmem:[%s1 + $0xb8] sm:$0xf]
    %v128 = vld [vmem:[%s1 + $0xbc] sm:$0xf]
    %v129 = vld [vmem:[%s1 + $0xc0] sm:$0xf]
    %v130 = vld [vmem:[%s1 + $0xc4] sm:$0xf]
    %v131 = vld [vmem:[%s1 + $0xc8] sm:$0xf]
    %v132 = vld [vmem:[%s1 + $0xcc] sm:$0xf]
    %v133 = vld [vmem:[%s1 + $0xd0] sm:$0xf]
    %v134 = vld [vmem:[%s1 + $0xd4] sm:$0xf]
    %v135 = vld [vmem:[%s1 + $0xd8] sm:$0xf]
    %v136 = vld [vmem:[%s1 + $0xdc] sm:$0xf]
    %v137 = vld [vmem:[%s1 + $0xe0] sm:$0xf]
    %v138 = vld [vmem:[%s1 + $0xe4] sm:$0xf]
    %v139 = vld [vmem:[%s1 + $0xe8] sm:$0xf]
    %v140 = vld [vmem:[%s1 + $0xec] sm:$0xf]
    %v141 = vld [vmem:[%s1 + $0xf0] sm:$0xf]
    %v142 = vld [vmem:[%s1 + $0xf4] sm:$0xf]
    %v143 = vld [vmem:[%s1 + $0xf8] sm:$0xf]
    %v144 = vld [vmem:[%s1 + $0xfc] sm:$0xf]
    %v145 = vld [vmem:[%s1 + $0x100] sm:$0xf]
    %v146 = vld [vmem:[%s1 + $0x104] sm:$0xf]
    %v147 = vld [vmem:[%s1 + $0x108] sm:$0xf]
    %v148 = vld [vmem:[%s1 + $0x10c] sm:$0xf]
    %v149 = vld [vmem:[%s1 + $0x110] sm:$0xf]
    %v150 = vld [vmem:[%s1 + $0x114] sm:$0xf]
    %v151 = vld [vmem:[%s1 + $0x118] sm:$0xf]
    %v152 = vld [vmem:[%s1 + $0x11c] sm:$0xf]
    %v153 = vld [vmem:[%s1 + $0x120] sm:$0xf]
    %v154 = vld [vmem:[%s1 + $0x124] sm:$0xf]
    %v155 = vld [vmem:[%s1 + $0x128] sm:$0xf]
    %v156 = vld [vmem:[%s1 + $0x12c] sm:$0xf]
    %v157 = vld [vmem:[%s1 + $0x130] sm:$0xf]
    %v158 = vld [vmem:[%s1 + $0x134] sm:$0xf]
    %v159 = vld [vmem:[%s1 + $0x138] sm:$0xf]
    %v160 = vld [vmem:[%s1 + $0x13c] sm:$0xf]
    %v161 = vld [vmem:[%s1 + $0x140] sm:$0xf]
    %v162 = vld [vmem:[%s1 + $0x144] sm:$0xf]
    %v163 = vld [vmem:[%s1 + $0x148] sm:$0xf]
    %v164 = vld [vmem:[%s1 + $0x14c] sm:$0xf]
    %v165 = vld [vmem:[%s1 + $0x150] sm:$0xf]
    %v166 = vld [vmem:[%s1 + $0x154] sm:$0xf]
    %v167 = vld [vmem:[%s1 + $0x158] sm:$0xf]
    %v168 = vld [vmem:[%s1 + $0x15c] sm:$0xf]
    %v169 = vld [vmem:[%s1 + $0x160] sm:$0xf]
    %v170 = vld [vmem:[%s1 + $0x164] sm:$0xf]
    %v171 = vld [vmem:[%s1 + $0x168] sm:$0xf]
    %v172 = vld [vmem:[%s1 + $0x16c] sm:$0xf]
    %v173 = vld [vmem:[%s1 + $0x170] sm:$0xf]
    %v174 = vld [vmem:[%s1 + $0x174] sm:$0xf]
    %v175 = vld [vmem:[%s1 + $0x178] sm:$0xf]
    %v176 = vld [vmem:[%s1 + $0x17c] sm:$0xf]
    %v177 = vld [vmem:[%s1 + $0x180] sm:$0xf]
    %v178 = vld [vmem:[%s1 + $0x184] sm:$0xf]
    %v179 = vld [vmem:[%s1 + $0x188] sm:$0xf]
    %v180 = vld [vmem:[%s1 + $0x18c] sm:$0xf]
    %v181 = vld [vmem:[%s1 + $0x190] sm:$0xf]
    %v182 = vld [vmem:[%s1 + $0x194] sm:$0xf]
    %v183 = vld [vmem:[%s1 + $0x198] sm:$0xf]
    %v184 = vld [vmem:[%s1 + $0x19c] sm:$0xf]
    %v185 = vld [vmem:[%s1 + $0x1a0] sm:$0xf]
    %v186 = vld [vmem:[%s1 + $0x1a4] sm:$0xf]
    %v187 = vld [vmem:[%s1 + $0x1a8] sm:$0xf]
    %v188 = vld [vmem:[%s1 + $0x1ac] sm:$0xf]
    %v189 = vld [vmem:[%s1 + $0x1b0] sm:$0xf]
    %v190 = vld [vmem:[%s1 + $0x1b4] sm:$0xf]
    %v191 = vld [vmem:[%s1 + $0x1b8] sm:$0xf]
    %v192 = vld [vmem:[%s1 + $0x1bc] sm:$0xf]
    %v193 = vld [vmem:[%s1 + $0x1c0] sm:$0xf]
    %v194 = vld [vmem:[%s1 + $0x1c4] sm:$0xf]
    %v195 = vld [vmem:[%s1 + $0x1c8] sm:$0xf]
    %v196 = vld [vmem:[%s1 + $0x1cc] sm:$0xf]
    %v197 = vld [vmem:[%s1 + $0x1d0] sm:$0xf]
    %v198 = vld [vmem:[%s1 + $0x1d4] sm:$0xf]
    %v199 = vld [vmem:[%s1 + $0x1d8] sm:$0xf]
    %v200 = vld [vmem:[%s1 + $0x1dc] sm:$0xf]
    %v201 = vld [vmem:[%s1 + $0x1e0] sm:$0xf]
    %v202 = vld [vmem:[%s1 + $0x1e4] sm:$0xf]
    %v203 = vld [vmem:[%s1 + $0x1e8] sm:$0xf]
    %v204 = vld [vmem:[%s1 + $0x1ec] sm:$0xf]
    %v205 = vld [vmem:[%s1 + $0x1f0] sm:$0xf]
    %v206 = vld [vmem:[%s1 + $0x1f4] sm:$0xf]
    %v207 = vld [vmem:[%s1 + $0x1f8] sm:$0xf]
    %v208 = vld [vmem:[%s1 + $0x1fc] sm:$0xf]
    %v209 = vld [vmem:[#allocation2] sm:$0x3]
    %v338 = vunpack.c.l.b16 %v81
    %v339 = vunpack.c.l.b16 %v82
    %v340 = vunpack.c.l.b16 %v83
    %v341 = vunpack.c.l.b16 %v84
    %v342 = vunpack.c.l.b16 %v85
    %v343 = vunpack.c.l.b16 %v86
    %v344 = vunpack.c.l.b16 %v87
    %v345 = vunpack.c.l.b16 %v88
    %v346 = vunpack.c.l.b16 %v89
    %v347 = vunpack.c.l.b16 %v90
    %v348 = vunpack.c.l.b16 %v91
    %v349 = vunpack.c.l.b16 %v92
    %v350 = vunpack.c.l.b16 %v93
    %v351 = vunpack.c.l.b16 %v94
    %v352 = vunpack.c.l.b16 %v95
    %v353 = vunpack.c.l.b16 %v96
    %v354 = vunpack.c.l.b16 %v97
    %v355 = vunpack.c.l.b16 %v98
    %v356 = vunpack.c.l.b16 %v99
    %v357 = vunpack.c.l.b16 %v100
    %v358 = vunpack.c.l.b16 %v101
    %v359 = vunpack.c.l.b16 %v102
    %v360 = vunpack.c.l.b16 %v103
    %v361 = vunpack.c.l.b16 %v104
    %v362 = vunpack.c.l.b16 %v105
    %v363 = vunpack.c.l.b16 %v106
    %v364 = vunpack.c.l.b16 %v107
    %v365 = vunpack.c.l.b16 %v108
    %v366 = vunpack.c.l.b16 %v109
    %v367 = vunpack.c.l.b16 %v110
    %v368 = vunpack.c.l.b16 %v111
    %v369 = vunpack.c.l.b16 %v112
    %v370 = vunpack.c.l.b16 %v113
    %v371 = vunpack.c.l.b16 %v114
    %v372 = vunpack.c.l.b16 %v115
    %v373 = vunpack.c.l.b16 %v116
    %v374 = vunpack.c.l.b16 %v117
    %v375 = vunpack.c.l.b16 %v118
    %v376 = vunpack.c.l.b16 %v119
    %v377 = vunpack.c.l.b16 %v120
    %v378 = vunpack.c.l.b16 %v121
    %v379 = vunpack.c.l.b16 %v122
    %v380 = vunpack.c.l.b16 %v123
    %v381 = vunpack.c.l.b16 %v124
    %v382 = vunpack.c.l.b16 %v125
    %v383 = vunpack.c.l.b16 %v126
    %v384 = vunpack.c.l.b16 %v127
    %v385 = vunpack.c.l.b16 %v128
    %v386 = vunpack.c.l.b16 %v129
    %v387 = vunpack.c.l.b16 %v130
    %v388 = vunpack.c.l.b16 %v131
    %v389 = vunpack.c.l.b16 %v132
    %v390 = vunpack.c.l.b16 %v133
    %v391 = vunpack.c.l.b16 %v134
    %v392 = vunpack.c.l.b16 %v135
    %v393 = vunpack.c.l.b16 %v136
    %v394 = vunpack.c.l.b16 %v137
    %v395 = vunpack.c.l.b16 %v138
    %v396 = vunpack.c.l.b16 %v139
    %v397 = vunpack.c.l.b16 %v140
    %v398 = vunpack.c.l.b16 %v141
    %v399 = vunpack.c.l.b16 %v142
    %v400 = vunpack.c.l.b16 %v143
    %v401 = vunpack.c.l.b16 %v144
    %v402 = vunpack.c.l.b16 %v145
    %v403 = vunpack.c.l.b16 %v146
    %v404 = vunpack.c.l.b16 %v147
    %v405 = vunpack.c.l.b16 %v148
    %v406 = vunpack.c.l.b16 %v149
    %v407 = vunpack.c.l.b16 %v150
    %v408 = vunpack.c.l.b16 %v151
    %v409 = vunpack.c.l.b16 %v152
    %v410 = vunpack.c.l.b16 %v153
    %v411 = vunpack.c.l.b16 %v154
    %v412 = vunpack.c.l.b16 %v155
    %v413 = vunpack.c.l.b16 %v156
    %v414 = vunpack.c.l.b16 %v157
    %v415 = vunpack.c.l.b16 %v158
    %v416 = vunpack.c.l.b16 %v159
    %v417 = vunpack.c.l.b16 %v160
    %v418 = vunpack.c.l.b16 %v161
    %v419 = vunpack.c.l.b16 %v162
    %v420 = vunpack.c.l.b16 %v163
    %v421 = vunpack.c.l.b16 %v164
    %v422 = vunpack.c.l.b16 %v165
    %v423 = vunpack.c.l.b16 %v166
    %v424 = vunpack.c.l.b16 %v167
    %v425 = vunpack.c.l.b16 %v168
    %v426 = vunpack.c.l.b16 %v169
    %v427 = vunpack.c.l.b16 %v170
    %v428 = vunpack.c.l.b16 %v171
    %v429 = vunpack.c.l.b16 %v172
    %v430 = vunpack.c.l.b16 %v173
    %v431 = vunpack.c.l.b16 %v174
    %v432 = vunpack.c.l.b16 %v175
    %v433 = vunpack.c.l.b16 %v176
    %v434 = vunpack.c.l.b16 %v177
    %v435 = vunpack.c.l.b16 %v178
    %v436 = vunpack.c.l.b16 %v179
    %v437 = vunpack.c.l.b16 %v180
    %v438 = vunpack.c.l.b16 %v181
    %v439 = vunpack.c.l.b16 %v182
    %v440 = vunpack.c.l.b16 %v183
    %v441 = vunpack.c.l.b16 %v184
    %v442 = vunpack.c.l.b16 %v185
    %v443 = vunpack.c.l.b16 %v186
    %v444 = vunpack.c.l.b16 %v187
    %v445 = vunpack.c.l.b16 %v188
    %v446 = vunpack.c.l.b16 %v189
    %v447 = vunpack.c.l.b16 %v190
    %v448 = vunpack.c.l.b16 %v191
    %v449 = vunpack.c.l.b16 %v192
    %v450 = vunpack.c.l.b16 %v193
    %v451 = vunpack.c.l.b16 %v194
    %v452 = vunpack.c.l.b16 %v195
    %v453 = vunpack.c.l.b16 %v196
    %v454 = vunpack.c.l.b16 %v197
    %v455 = vunpack.c.l.b16 %v198
    %v456 = vunpack.c.l.b16 %v199
    %v457 = vunpack.c.l.b16 %v200
    %v458 = vunpack.c.l.b16 %v201
    %v459 = vunpack.c.l.b16 %v202
    %v460 = vunpack.c.l.b16 %v203
    %v461 = vunpack.c.l.b16 %v204
    %v462 = vunpack.c.l.b16 %v205
    %v463 = vunpack.c.l.b16 %v206
    %v464 = vunpack.c.l.b16 %v207
    %v465 = vunpack.c.l.b16 %v208
    %v466 = vpack.c.b16 %v339, %v338
    %v467 = vpack.c.b16 %v341, %v340
    %v468 = vpack.c.b16 %v343, %v342
    %v469 = vpack.c.b16 %v345, %v344
    %v470 = vpack.c.b16 %v347, %v346
    %v471 = vpack.c.b16 %v349, %v348
    %v472 = vpack.c.b16 %v351, %v350
    %v473 = vpack.c.b16 %v353, %v352
    %v474 = vpack.c.b16 %v355, %v354
    %v475 = vpack.c.b16 %v357, %v356
    %v476 = vpack.c.b16 %v359, %v358
    %v477 = vpack.c.b16 %v361, %v360
    %v478 = vpack.c.b16 %v363, %v362
    %v479 = vpack.c.b16 %v365, %v364
    %v480 = vpack.c.b16 %v367, %v366
    %v481 = vpack.c.b16 %v369, %v368
    %v482 = vpack.c.b16 %v371, %v370
    %v483 = vpack.c.b16 %v373, %v372
    %v484 = vpack.c.b16 %v375, %v374
    %v485 = vpack.c.b16 %v377, %v376
    %v486 = vpack.c.b16 %v379, %v378
    %v487 = vpack.c.b16 %v381, %v380
    %v488 = vpack.c.b16 %v383, %v382
    %v489 = vpack.c.b16 %v385, %v384
    %v490 = vpack.c.b16 %v387, %v386
    %v491 = vpack.c.b16 %v389, %v388
    %v492 = vpack.c.b16 %v391, %v390
    %v493 = vpack.c.b16 %v393, %v392
    %v494 = vpack.c.b16 %v395, %v394
    %v495 = vpack.c.b16 %v397, %v396
    %v496 = vpack.c.b16 %v399, %v398
    %v497 = vpack.c.b16 %v401, %v400
    %v498 = vpack.c.b16 %v403, %v402
    %v499 = vpack.c.b16 %v405, %v404
    %v500 = vpack.c.b16 %v407, %v406
    %v501 = vpack.c.b16 %v409, %v408
    %v502 = vpack.c.b16 %v411, %v410
    %v503 = vpack.c.b16 %v413, %v412
    %v504 = vpack.c.b16 %v415, %v414
    %v505 = vpack.c.b16 %v417, %v416
    %v506 = vpack.c.b16 %v419, %v418
    %v507 = vpack.c.b16 %v421, %v420
    %v508 = vpack.c.b16 %v423, %v422
    %v509 = vpack.c.b16 %v425, %v424
    %v510 = vpack.c.b16 %v427, %v426
    %v511 = vpack.c.b16 %v429, %v428
    %v512 = vpack.c.b16 %v431, %v430
    %v513 = vpack.c.b16 %v433, %v432
    %v514 = vpack.c.b16 %v435, %v434
    %v515 = vpack.c.b16 %v437, %v436
    %v516 = vpack.c.b16 %v439, %v438
    %v517 = vpack.c.b16 %v441, %v440
    %v518 = vpack.c.b16 %v443, %v442
    %v519 = vpack.c.b16 %v445, %v444
    %v520 = vpack.c.b16 %v447, %v446
    %v521 = vpack.c.b16 %v449, %v448
    %v522 = vpack.c.b16 %v451, %v450
    %v523 = vpack.c.b16 %v453, %v452
    %v524 = vpack.c.b16 %v455, %v454
    %v525 = vpack.c.b16 %v457, %v456
    %v526 = vpack.c.b16 %v459, %v458
    %v527 = vpack.c.b16 %v461, %v460
    %v528 = vpack.c.b16 %v463, %v462
    %v529 = vpack.c.b16 %v465, %v464
    %594 = vmatprep.subr.bf16.mxu0 0
    %595 = vmatpush1.bf16.msra.mxu0 %v473
    %596 = vmatprep.subr.bf16.mxu0 0
    %597 = vmatpush1.bf16.msra.mxu0 %v472
    %598 = vmatprep.subr.bf16.mxu0 0
    %599 = vmatpush1.bf16.msra.mxu0 %v471
    %600 = vmatprep.subr.bf16.mxu0 0
    %601 = vmatpush1.bf16.msra.mxu0 %v470
    %602 = vmatprep.subr.bf16.mxu0 0
    %603 = vmatpush1.bf16.msra.mxu0 %v469
    %604 = vmatprep.subr.bf16.mxu0 0
    %605 = vmatpush1.bf16.msra.mxu0 %v468
    %606 = vmatprep.subr.bf16.mxu0 0
    %607 = vmatpush1.bf16.msra.mxu0 %v467
    %608 = vmatprep.subr.bf16.mxu0 0
    %609 = vmatpush1.bf16.msra.mxu0 %v466
    %610 = vmatprep.subr.bf16.mxu0 0
    %611 = vmatpush2.bf16.msra.mxu0 %v481
    %612 = vmatprep.subr.bf16.mxu0 0
    %613 = vmatpush2.bf16.msra.mxu0 %v480
    %614 = vmatprep.subr.bf16.mxu0 0
    %615 = vmatpush2.bf16.msra.mxu0 %v479
    %616 = vmatprep.subr.bf16.mxu0 0
    %617 = vmatpush2.bf16.msra.mxu0 %v478
    %618 = vmatprep.subr.bf16.mxu0 0
    %619 = vmatpush2.bf16.msra.mxu0 %v477
    %620 = vmatprep.subr.bf16.mxu0 0
    %621 = vmatpush2.bf16.msra.mxu0 %v476
    %622 = vmatprep.subr.bf16.mxu0 0
    %623 = vmatpush2.bf16.msra.mxu0 %v475
    %624 = vmatprep.subr.bf16.mxu0 0
    %625 = vmatpush2.bf16.msra.mxu0 %v474
    %626 = vmatprep.mubr.bf16.mxu0 %v74
    %627 = vmatmul.mubr.bf16.gmra.mxu0 %v73
    %v628 = vpop.f32.mrf.mxu0
    %v629 = vadd.f32 0.0, %v628
    %v630 = vpop.f32.mrf.mxu0
    %v631 = vpop.f32.mrf.mxu0
    %v632 = vpop.f32.mrf.mxu0
    %633 = vdwg.mxu0
    %634 = vmatprep.subr.bf16.mxu0 0
    %635 = vmatpush1.bf16.msra.mxu0 %v489
    %636 = vmatprep.subr.bf16.mxu0 0
    %637 = vmatpush1.bf16.msra.mxu0 %v488
    %638 = vmatprep.subr.bf16.mxu0 0
    %639 = vmatpush1.bf16.msra.mxu0 %v487
    %640 = vmatprep.subr.bf16.mxu0 0
    %641 = vmatpush1.bf16.msra.mxu0 %v486
    %642 = vmatprep.subr.bf16.mxu0 0
    %643 = vmatpush1.bf16.msra.mxu0 %v485
    %644 = vmatprep.subr.bf16.mxu0 0
    %645 = vmatpush1.bf16.msra.mxu0 %v484
    %646 = vmatprep.subr.bf16.mxu0 0
    %647 = vmatpush1.bf16.msra.mxu0 %v483
    %648 = vmatprep.subr.bf16.mxu0 0
    %649 = vmatpush1.bf16.msra.mxu0 %v482
    %650 = vmatprep.subr.bf16.mxu0 0
    %651 = vmatpush2.bf16.msra.mxu0 %v497
    %652 = vmatprep.subr.bf16.mxu0 0
    %653 = vmatpush2.bf16.msra.mxu0 %v496
    %654 = vmatprep.subr.bf16.mxu0 0
    %655 = vmatpush2.bf16.msra.mxu0 %v495
    %656 = vmatprep.subr.bf16.mxu0 0
    %657 = vmatpush2.bf16.msra.mxu0 %v494
    %658 = vmatprep.subr.bf16.mxu0 0
    %659 = vmatpush2.bf16.msra.mxu0 %v493
    %660 = vmatprep.subr.bf16.mxu0 0
    %661 = vmatpush2.bf16.msra.mxu0 %v492
    %662 = vmatprep.subr.bf16.mxu0 0
    %663 = vmatpush2.bf16.msra.mxu0 %v491
    %664 = vmatprep.subr.bf16.mxu0 0
    %665 = vmatpush2.bf16.msra.mxu0 %v490
    %666 = vmatprep.mubr.bf16.mxu0 %v76
    %667 = vmatmul.mubr.bf16.gmra.mxu0 %v75
    %v668 = vpop.f32.mrf.mxu0
    %v669 = vadd.f32 %v629, %v668
    %v670 = vpop.f32.mrf.mxu0
    %v671 = vpop.f32.mrf.mxu0
    %v672 = vpop.f32.mrf.mxu0
    %673 = vdwg.mxu0
    %674 = vmatprep.subr.bf16.mxu0 0
    %675 = vmatpush1.bf16.msra.mxu0 %v505
    %676 = vmatprep.subr.bf16.mxu0 0
    %677 = vmatpush1.bf16.msra.mxu0 %v504
    %678 = vmatprep.subr.bf16.mxu0 0
    %679 = vmatpush1.bf16.msra.mxu0 %v503
    %680 = vmatprep.subr.bf16.mxu0 0
    %681 = vmatpush1.bf16.msra.mxu0 %v502
    %682 = vmatprep.subr.bf16.mxu0 0
    %683 = vmatpush1.bf16.msra.mxu0 %v501
    %684 = vmatprep.subr.bf16.mxu0 0
    %685 = vmatpush1.bf16.msra.mxu0 %v500
    %686 = vmatprep.subr.bf16.mxu0 0
    %687 = vmatpush1.bf16.msra.mxu0 %v499
    %688 = vmatprep.subr.bf16.mxu0 0
    %689 = vmatpush1.bf16.msra.mxu0 %v498
    %690 = vmatprep.subr.bf16.mxu0 0
    %691 = vmatpush2.bf16.msra.mxu0 %v513
    %692 = vmatprep.subr.bf16.mxu0 0
    %693 = vmatpush2.bf16.msra.mxu0 %v512
    %694 = vmatprep.subr.bf16.mxu0 0
    %695 = vmatpush2.bf16.msra.mxu0 %v511
    %696 = vmatprep.subr.bf16.mxu0 0
    %697 = vmatpush2.bf16.msra.mxu0 %v510
    %698 = vmatprep.subr.bf16.mxu0 0
    %699 = vmatpush2.bf16.msra.mxu0 %v509
    %700 = vmatprep.subr.bf16.mxu0 0
    %701 = vmatpush2.bf16.msra.mxu0 %v508
    %702 = vmatprep.subr.bf16.mxu0 0
    %703 = vmatpush2.bf16.msra.mxu0 %v507
    %704 = vmatprep.subr.bf16.mxu0 0
    %705 = vmatpush2.bf16.msra.mxu0 %v506
    %706 = vmatprep.mubr.bf16.mxu0 %v78
    %707 = vmatmul.mubr.bf16.gmra.mxu0 %v77
    %v708 = vpop.f32.mrf.mxu0
    %v709 = vadd.f32 %v669, %v708
    %v710 = vpop.f32.mrf.mxu0
    %v711 = vpop.f32.mrf.mxu0
    %v712 = vpop.f32.mrf.mxu0
    %713 = vdwg.mxu0
    %714 = vmatprep.subr.bf16.mxu0 0
    %715 = vmatpush1.bf16.msra.mxu0 %v521
    %716 = vmatprep.subr.bf16.mxu0 0
    %717 = vmatpush1.bf16.msra.mxu0 %v520
    %718 = vmatprep.subr.bf16.mxu0 0
    %719 = vmatpush1.bf16.msra.mxu0 %v519
    %720 = vmatprep.subr.bf16.mxu0 0
    %721 = vmatpush1.bf16.msra.mxu0 %v518
    %722 = vmatprep.subr.bf16.mxu0 0
    %723 = vmatpush1.bf16.msra.mxu0 %v517
    %724 = vmatprep.subr.bf16.mxu0 0
    %725 = vmatpush1.bf16.msra.mxu0 %v516
    %726 = vmatprep.subr.bf16.mxu0 0
    %727 = vmatpush1.bf16.msra.mxu0 %v515
    %728 = vmatprep.subr.bf16.mxu0 0
    %729 = vmatpush1.bf16.msra.mxu0 %v514
    %730 = vmatprep.subr.bf16.mxu0 0
    %731 = vmatpush2.bf16.msra.mxu0 %v529
    %732 = vmatprep.subr.bf16.mxu0 0
    %733 = vmatpush2.bf16.msra.mxu0 %v528
    %734 = vmatprep.subr.bf16.mxu0 0
    %735 = vmatpush2.bf16.msra.mxu0 %v527
    %736 = vmatprep.subr.bf16.mxu0 0
    %737 = vmatpush2.bf16.msra.mxu0 %v526
    %738 = vmatprep.subr.bf16.mxu0 0
    %739 = vmatpush2.bf16.msra.mxu0 %v525
    %740 = vmatprep.subr.bf16.mxu0 0
    %741 = vmatpush2.bf16.msra.mxu0 %v524
    %742 = vmatprep.subr.bf16.mxu0 0
    %743 = vmatpush2.bf16.msra.mxu0 %v523
    %744 = vmatprep.subr.bf16.mxu0 0
    %745 = vmatpush2.bf16.msra.mxu0 %v522
    %746 = vmatprep.mubr.bf16.mxu0 %v80
    %747 = vmatmul.mubr.bf16.gmra.mxu0 %v79
    %v748 = vpop.f32.mrf.mxu0
    %v749 = vadd.f32 %v709, %v748
    %v750 = vpop.f32.mrf.mxu0
    %v751 = vpop.f32.mrf.mxu0
    %v752 = vpop.f32.mrf.mxu0
    %753 = vdwg.mxu0
    %v754 = vadd.f32 %v209, %v749
    %755 = vst [vmem:[#allocation2] sm:$0x3] %v754
    // Predicated region
    $region26: #{encoder_with_head.1} parent=1 // pred_check
      %p756 = pneg %p22
    $region27: #{encoder_with_head.1} parent=1 // pred_check_branch
      %758 = sbr.rel (%p756) target = $region29
    $region28: #{encoder_with_head.1} parent=1 // pred_region
      %v759 = vld [vmem:[#allocation2] sm:$0x3]
      %v760 = vld [vmem:[%s2] sm:$0x1]
      %v762 = vlaneseq
      %v763 = vshrl.u32 %v762, 7
      %v764 = vsub.s32 0, %v763
      %v765 = vrot.slane %v760, %v764
      %v767 = vadd.f32 %v759, %v765
      %v768 = vmax.f32 %v767, 0.0
      %v769 = vld [vmem:[%s3] sm:$0xff]
      %v770 = vld [vmem:[%s3 + $0x8] sm:$0xff]
      %v771 = vld [vmem:[%s3 + $0x10] sm:$0xff]
      %v772 = vld [vmem:[%s3 + $0x18] sm:$0xff]
      %v773 = vld [vmem:[%s3 + $0x20] sm:$0xff]
      %v774 = vld [vmem:[%s3 + $0x28] sm:$0xff]
      %v775 = vld [vmem:[%s3 + $0x30] sm:$0xff]
      %v776 = vld [vmem:[%s3 + $0x38] sm:$0xff]
      %v777 = vld [vmem:[%s3 + $0x40] sm:$0xff]
      %v778 = vld [vmem:[%s3 + $0x48] sm:$0xff]
      %v779 = vld [vmem:[%s3 + $0x50] sm:$0xff]
      %v780 = vld [vmem:[%s3 + $0x58] sm:$0xff]
      %v781 = vld [vmem:[%s3 + $0x60] sm:$0xff]
      %v782 = vld [vmem:[%s3 + $0x68] sm:$0xff]
      %v783 = vld [vmem:[%s3 + $0x70] sm:$0xff]
      %v784 = vld [vmem:[%s3 + $0x78] sm:$0xff]
      %v785 = vld [vmem:[%s4] sm:$0x1]
      %v787 = vlaneseq
      %v788 = vshrl.u32 %v787, 7
      %v789 = vsub.s32 0, %v788
      %v790 = vrot.slane %v785, %v789
      %792 = vmatprep.subr.mxu0 0.0
      %793 = vmatpush1.msra.mxu0 %v784
      %794 = vmatprep.subr.mxu0 0.0
      %795 = vmatpush1.msra.mxu0 %v783
      %796 = vmatprep.subr.mxu0 0.0
      %797 = vmatpush1.msra.mxu0 %v782
      %798 = vmatprep.subr.mxu0 0.0
      %799 = vmatpush1.msra.mxu0 %v781
      %800 = vmatprep.subr.mxu0 0.0
      %801 = vmatpush1.msra.mxu0 %v780
      %802 = vmatprep.subr.mxu0 0.0
      %803 = vmatpush1.msra.mxu0 %v779
      %804 = vmatprep.subr.mxu0 0.0
      %805 = vmatpush1.msra.mxu0 %v778
      %806 = vmatprep.subr.mxu0 0.0
      %807 = vmatpush1.msra.mxu0 %v777
      %808 = vmatprep.subr.mxu0 0.0
      %809 = vmatpush1.msra.mxu0 %v776
      %810 = vmatprep.subr.mxu0 0.0
      %811 = vmatpush1.msra.mxu0 %v775
      %812 = vmatprep.subr.mxu0 0.0
      %813 = vmatpush1.msra.mxu0 %v774
      %814 = vmatprep.subr.mxu0 0.0
      %815 = vmatpush1.msra.mxu0 %v773
      %816 = vmatprep.subr.mxu0 0.0
      %817 = vmatpush1.msra.mxu0 %v772
      %818 = vmatprep.subr.mxu0 0.0
      %819 = vmatpush1.msra.mxu0 %v771
      %820 = vmatprep.subr.mxu0 0.0
      %821 = vmatpush1.msra.mxu0 %v770
      %822 = vmatprep.subr.mxu0 0.0
      %823 = vmatpush1.msra.mxu0 %v769
      %824 = vmatprep.subr.mxu0 0.0
      %825 = vmatpush2.msra.mxu0 0.0
      %826 = vmatprep.subr.mxu0 0.0
      %827 = vmatpush2.msra.mxu0 0.0
      %828 = vmatprep.subr.mxu0 0.0
      %829 = vmatpush2.msra.mxu0 0.0
      %830 = vmatprep.subr.mxu0 0.0
      %831 = vmatpush2.msra.mxu0 0.0
      %832 = vmatprep.subr.mxu0 0.0
      %833 = vmatpush2.msra.mxu0 0.0
      %834 = vmatprep.subr.mxu0 0.0
      %835 = vmatpush2.msra.mxu0 0.0
      %836 = vmatprep.subr.mxu0 0.0
      %837 = vmatpush2.msra.mxu0 0.0
      %838 = vmatprep.subr.mxu0 0.0
      %839 = vmatpush2.msra.mxu0 0.0
      %840 = vmatprep.subr.mxu0 0.0
      %841 = vmatpush2.msra.mxu0 0.0
      %842 = vmatprep.subr.mxu0 0.0
      %843 = vmatpush2.msra.mxu0 0.0
      %844 = vmatprep.subr.mxu0 0.0
      %845 = vmatpush2.msra.mxu0 0.0
      %846 = vmatprep.subr.mxu0 0.0
      %847 = vmatpush2.msra.mxu0 0.0
      %848 = vmatprep.subr.mxu0 0.0
      %849 = vmatpush2.msra.mxu0 0.0
      %850 = vmatprep.subr.mxu0 0.0
      %851 = vmatpush2.msra.mxu0 0.0
      %852 = vmatprep.subr.mxu0 0.0
      %853 = vmatpush2.msra.mxu0 0.0
      %854 = vmatprep.subr.mxu0 0.0
      %855 = vmatpush2.msra.mxu0 0.0
      %856 = vmatprep.mubr.f32.mxu0 0.0
      %857 = vmatmul.mubr.f32.gmra.mxu0 %v768
      %v858 = vpop.f32.mrf.mxu0
      %v859 = vadd.f32 %v790, %v858
      %v860 = vpop.f32.mrf.mxu0
      %861 = vdwg.mxu0
      %862 = vst [vmem:[#allocation3] sm:$0x3] %v859
    $region29: #{encoder_with_head.1} parent=1 // pred_fallthru
      _
    // Predicated region
    $region30: #{encoder_with_head.1} parent=1 // pred_check
      _
    $region31: #{encoder_with_head.1} parent=1 // pred_check_branch
      %864 = sbr.rel (0) target = $region33
    $region32: #{encoder_with_head.1} parent=1 // pred_region
      %s866 = ssub.s32 32, 32
      %867 = vsyncadd [#allocation4], %s866
      %s869 = sshll.u32 [#allocation3], 4
      %s870 = int_to_ptr.vmem [resolvable:$true] %s869
      %872 = dma.vmem_to_hbm [thread:$0]  %s870, 32, %s5, [#allocation4]
    $region33: #{encoder_with_head.1} parent=1 // pred_fallthru
      _
    // Predicated region
    $region34: #{encoder_with_head.1} parent=1 // pred_check
      _
    $region35: #{encoder_with_head.1} parent=1 // pred_check_branch
      %874 = sbr.rel (0) target = $region37
    $region36: #{encoder_with_head.1} parent=1 // pred_region
      %875 = dma.done [#allocation4], 32
    $region37: #{encoder_with_head.1} parent=1 // pred_fallthru
      _
    %876 = vsyncpa [#allocation4], 1

</llo_original>
